<compile_context>
chip_gen: v6e
topology: v6e:2x2x1
jax: 0.10.0
libtpu: 0.0.40
codegen_flags: <defaults>
</compile_context>

<pallas_src>
import functools
import math
import numpy as np
import jax
import jax.numpy as jnp
from jax.experimental import pallas as pl
from jax.experimental.pallas import tpu as pltpu

_INV_SQRT2 = 0.7071067811865476
_LN_EPS = 1e-5  # PyTorch LayerNorm default


def patch_embed_kernel(xp_ref, w_ref, gamma_ref, beta_ref, o_ref, *, approximate_gelu):
    # Conv1d patchify as a single MXU contraction: (TE, C*K) @ (C*K, L_out) -> (TE, L_out).
    # Conv bias intentionally omitted: the per-row LayerNorm mean subtraction cancels it exactly.
    y = jnp.dot(w_ref[...], xp_ref[...], preferred_element_type=jnp.float32)

    # Single-pass LN statistics over the lane (length) axis.
    # Cross-lane reductions go to the MXU (dot with a ones column) instead of the XLU; the MXU's
    # only other work in this kernel is the tiny K=C*stride contraction above, so these are free.
    l_out = y.shape[-1]
    ones_col = jnp.ones((l_out, 1), dtype=jnp.float32)
    s = jnp.dot(y, ones_col, preferred_element_type=jnp.float32)        # (TE, 1) sum
    s2 = jnp.dot(y * y, ones_col, preferred_element_type=jnp.float32)   # (TE, 1) sum of squares
    inv_n = 1.0 / l_out
    mean = s * inv_n
    var = s2 * inv_n - mean * mean                                      # biased variance (LN)
    inv_std = jax.lax.rsqrt(var + _LN_EPS)                              # EUP rsqrt

    yn = (y - mean) * inv_std                                           # (TE,1) broadcasts
    yn = yn * gamma_ref[...] + beta_ref[...]                            # (1, L_out) broadcasts

    if approximate_gelu:
        # tanh form: routes to the EUP, frees the VALU. ~1e-3 rel. error vs exact erf GELU.
        o_ref[...] = jax.nn.gelu(yn, approximate=True)
    else:
        # exact GELU: 0.5 * y * (1 + erf(y / sqrt(2))) -- matches PyTorch nn.GELU() default.
        o_ref[...] = 0.5 * yn * (1.0 + jax.lax.erf(yn * _INV_SQRT2))


def _pick_row_tile(e):
    """Largest E-tile <= 128 that divides E and keeps (8,128)-friendly sublanes.

    Prefers tiles that give >= 2 grid steps (megacore sharding + DMA/compute overlap); falls back
    to the full extent (always legal: block dim == array dim)."""
    if e <= 128:
        return e
    for te in range(128, 7, -8):          # multiples of 8, descending
        if e % te == 0:
            return te
    return e                               # full-extent fallback, grid = (1,)


def patch_embed(x, w, b, gamma, beta, *, stride, approximate_gelu=False):
    """x: (C, L) f32; w: (E, C, stride); b: (E,) (accepted for API parity, exactly cancelled by
    LayerNorm -> never touched); gamma/beta: (L//stride,).

    Returns (1, E, L//stride), matching PatchEmbed.forward(x)."""
    C, L = x.shape
    E, _, K = w.shape
    assert K == stride and L % stride == 0
    L_out = L // stride
    assert gamma.shape == (L_out,) and beta.shape == (L_out,), \
        "LayerNorm(512) normalizes the length axis of the conv output"

    # Conv bias is a per-row constant -> exactly removed by the LN mean subtraction.
    del b

    # Glue (plain JAX): non-overlapping patchify + weight flatten.  Tiny ((C*K) x L_out floats);
    # negligible next to the erf-GELU compute, so not worth strided in-kernel loads.
    # patches[c*stride + k, t] = x[c, t*stride + k]
    xp = x.reshape(C, L_out, stride).transpose(0, 2, 1).reshape(C * stride, L_out)
    w_mat = w.reshape(E, C * stride)

    TE = _pick_row_tile(E)
    grid = (E // TE,)

    kernel = functools.partial(patch_embed_kernel, approximate_gelu=approximate_gelu)

    out = pl.pallas_call(
        kernel,
        out_shape=jax.ShapeDtypeStruct((E, L_out), jnp.float32),
        grid_spec=pltpu.PrefetchScalarGridSpec(
            num_scalar_prefetch=0,
            grid=grid,
            in_specs=[
                pl.BlockSpec((C * stride, L_out), lambda i: (0, 0)),  # patches: resident
                pl.BlockSpec((TE, C * stride), lambda i: (i, 0)),     # weight rows: tiled w/ output
                pl.BlockSpec((1, L_out), lambda i: (0, 0)),           # LN gamma: resident
                pl.BlockSpec((1, L_out), lambda i: (0, 0)),           # LN beta: resident
            ],
            out_specs=pl.BlockSpec((TE, L_out), lambda i: (i, 0)),
        ),
        compiler_params=pltpu.CompilerParams(dimension_semantics=("parallel",)),
    )(xp, w_mat, gamma.reshape(1, L_out), beta.reshape(1, L_out))

    return out[None]  # restore unsqueeze(0) batch dim -> (1, E, L_out)


def _reference(x, w, b, gamma, beta, *, stride):
    """Pure-JAX reference of the PyTorch forward (keeps the conv bias and two-pass LN stats,
    proving the kernel's bias-drop / fused-stats simplifications are exact)."""
    C, L = x.shape
    E = w.shape[0]
    L_out = L // stride
    xp = x.reshape(C, L_out, stride).transpose(0, 2, 1).reshape(C * stride, L_out)
    y = w.reshape(E, C * stride) @ xp + b[:, None]          # (E, L_out)
    mean = y.mean(axis=-1, keepdims=True)
    var = ((y - mean) ** 2).mean(axis=-1, keepdims=True)
    y = (y - mean) / jnp.sqrt(var + _LN_EPS) * gamma[None, :] + beta[None, :]
    y = 0.5 * y * (1.0 + jax.lax.erf(y * _INV_SQRT2))
    return y[None]


if __name__ == "__main__":
    # Small shapes consistent with the module: LayerNorm(512) forces L // stride == 512.
    in_chans = 4
    stride = 2
    embed_dim = 256            # small, but > 128 so the E-axis grid (2 tiles) is exercised
    L = 512 * stride           # conv output length 512, matching nn.LayerNorm(512)

    key = jax.random.PRNGKey(0)
    kx, kw, kb, kg, kbe = jax.random.split(key, 5)

    x = jax.random.normal(kx, (in_chans, L), dtype=jnp.float32)

    # Deterministic synthetic parameters (shapes from __init__):
    #   Conv1d weight (embed_dim, in_chans, stride), bias (embed_dim,)
    #   LayerNorm(512) weight/bias (512,)
    fan_in = in_chans * stride
    w = jax.random.uniform(kw, (embed_dim, in_chans, stride), jnp.float32,
                           -1.0 / math.sqrt(fan_in), 1.0 / math.sqrt(fan_in))
    b = jax.random.uniform(kb, (embed_dim,), jnp.float32,
                           -1.0 / math.sqrt(fan_in), 1.0 / math.sqrt(fan_in))
    gamma = 1.0 + 0.1 * jax.random.normal(kg, (512,), dtype=jnp.float32)
    beta = 0.1 * jax.random.normal(kbe, (512,), dtype=jnp.float32)

    out = patch_embed(x, w, b, gamma, beta, stride=stride)
    out = jax.block_until_ready(out)

    ref = _reference(x, w, b, gamma, beta, stride=stride)
    np.testing.assert_allclose(np.asarray(out), np.asarray(ref), rtol=2e-5, atol=2e-5)

    print("KERNEL_OK")
</pallas_src>

<mosaic_0001>
module attributes {stable_mosaic.version = 11 : i64} {
  func.func @patch_embed_kernel(%arg0: i32, %arg1: memref<8x512xf32, #tpu.memory_space<vmem>>, %arg2: memref<128x8xf32, #tpu.memory_space<vmem>>, %arg3: memref<1x512xf32, #tpu.memory_space<vmem>>, %arg4: memref<1x512xf32, #tpu.memory_space<vmem>>, %arg5: memref<128x512xf32, #tpu.memory_space<vmem>>) attributes {dimension_semantics = [#tpu.dimension_semantics<parallel>], iteration_bounds = array<i64: 2>, scalar_prefetch = 0 : i64, scratch_operands = 0 : i64, tpu.core_type = #tpu.core_type<tc>, window_params = [{pipeline_mode = #tpu.pipeline_mode<synchronous>, transform_indices = @transform_0, window_bounds = array<i64: 8, 512>}, {transform_indices = @transform_1, window_bounds = array<i64: 128, 8>}, {pipeline_mode = #tpu.pipeline_mode<synchronous>, transform_indices = @transform_2, window_bounds = array<i64: 1, 512>}, {pipeline_mode = #tpu.pipeline_mode<synchronous>, transform_indices = @transform_3, window_bounds = array<i64: 1, 512>}, {transform_indices = @transform_4, window_bounds = array<i64: 128, 512>}]} {
    %c0 = arith.constant 0 : index
    %c0_0 = arith.constant 0 : index
    %0 = vector.load %arg2[%c0, %c0_0] : memref<128x8xf32, #tpu.memory_space<vmem>>, vector<128x8xf32>
    %c0_1 = arith.constant 0 : index
    %c0_2 = arith.constant 0 : index
    %1 = vector.load %arg1[%c0_1, %c0_2] : memref<8x512xf32, #tpu.memory_space<vmem>>, vector<8x512xf32>
    %cst = arith.constant dense<0.000000e+00> : vector<128x512xf32>
    %2 = tpu.matmul %0, %1, %cst {dimension_numbers = #tpu.dot_dimension_numbers<[1], [0], [0], [1], [0, 0, 1, 1], [], []>} : vector<128x8xf32>, vector<8x512xf32>, vector<128x512xf32> -> vector<128x512xf32>
    %cst_3 = arith.constant 1.000000e+00 : f32
    %3 = vector.broadcast %cst_3 : f32 to vector<512x1xf32>
    %cst_4 = arith.constant dense<0.000000e+00> : vector<128x1xf32>
    %4 = tpu.matmul %2, %3, %cst_4 {dimension_numbers = #tpu.dot_dimension_numbers<[1], [0], [0], [1], [0, 0, 1, 1], [], []>} : vector<128x512xf32>, vector<512x1xf32>, vector<128x1xf32> -> vector<128x1xf32>
    %5 = arith.mulf %2, %2 : vector<128x512xf32>
    %cst_5 = arith.constant dense<0.000000e+00> : vector<128x1xf32>
    %6 = tpu.matmul %5, %3, %cst_5 {dimension_numbers = #tpu.dot_dimension_numbers<[1], [0], [0], [1], [0, 0, 1, 1], [], []>} : vector<128x512xf32>, vector<512x1xf32>, vector<128x1xf32> -> vector<128x1xf32>
    %cst_6 = arith.constant 0.001953125 : f32
    %7 = vector.broadcast %cst_6 : f32 to vector<128x1xf32>
    %8 = arith.mulf %4, %7 : vector<128x1xf32>
    %cst_7 = arith.constant 0.001953125 : f32
    %9 = vector.broadcast %cst_7 : f32 to vector<128x1xf32>
    %10 = arith.mulf %6, %9 : vector<128x1xf32>
    %11 = arith.mulf %8, %8 : vector<128x1xf32>
    %12 = arith.subf %10, %11 : vector<128x1xf32>
    %cst_8 = arith.constant 9.99999974E-6 : f32
    %13 = vector.broadcast %cst_8 : f32 to vector<128x1xf32>
    %14 = arith.addf %12, %13 : vector<128x1xf32>
    %15 = math.rsqrt %14 : vector<128x1xf32>
    %16 = vector.broadcast %8 : vector<128x1xf32> to vector<128x512xf32>
    %17 = arith.subf %2, %16 : vector<128x512xf32>
    %18 = vector.broadcast %15 : vector<128x1xf32> to vector<128x512xf32>
    %19 = arith.mulf %17, %18 : vector<128x512xf32>
    %c0_9 = arith.constant 0 : index
    %c0_10 = arith.constant 0 : index
    %20 = vector.load %arg3[%c0_9, %c0_10] : memref<1x512xf32, #tpu.memory_space<vmem>>, vector<1x512xf32>
    %21 = vector.broadcast %20 : vector<1x512xf32> to vector<128x512xf32>
    %22 = arith.mulf %19, %21 : vector<128x512xf32>
    %c0_11 = arith.constant 0 : index
    %c0_12 = arith.constant 0 : index
    %23 = vector.load %arg4[%c0_11, %c0_12] : memref<1x512xf32, #tpu.memory_space<vmem>>, vector<1x512xf32>
    %24 = vector.broadcast %23 : vector<1x512xf32> to vector<128x512xf32>
    %25 = arith.addf %22, %24 : vector<128x512xf32>
    %cst_13 = arith.constant 5.000000e-01 : f32
    %26 = vector.broadcast %cst_13 : f32 to vector<128x512xf32>
    %27 = arith.mulf %26, %25 : vector<128x512xf32>
    %cst_14 = arith.constant 0.707106769 : f32
    %28 = vector.broadcast %cst_14 : f32 to vector<128x512xf32>
    %29 = arith.mulf %25, %28 : vector<128x512xf32>
    %30 = math.erf %29 : vector<128x512xf32>
    %cst_15 = arith.constant 1.000000e+00 : f32
    %31 = vector.broadcast %cst_15 : f32 to vector<128x512xf32>
    %32 = arith.addf %31, %30 : vector<128x512xf32>
    %33 = arith.mulf %27, %32 : vector<128x512xf32>
    %c0_16 = arith.constant 0 : index
    %c0_17 = arith.constant 0 : index
    %34 = vector.load %arg5[%c0_16, %c0_17] : memref<128x512xf32, #tpu.memory_space<vmem>>, vector<128x512xf32>
    tpu.vector_store %arg5[%c0_16, %c0_17], %33 {strides = array<i32>} : memref<128x512xf32, #tpu.memory_space<vmem>>, vector<128x512xf32>,
    return
  }
  func.func @transform_0(%arg0: i32) -> (i32, i32) {
    %c0_i32 = arith.constant 0 : i32
    %c0_i32_0 = arith.constant 0 : i32
    %c0_i32_1 = arith.constant 0 : i32
    return %c0_i32, %c0_i32_0 : i32, i32
  }
  func.func @transform_1(%arg0: i32) -> (i32, i32) {
    %c0_i32 = arith.constant 0 : i32
    %c0_i32_0 = arith.constant 0 : i32
    return %arg0, %c0_i32 : i32, i32
  }
  func.func @transform_2(%arg0: i32) -> (i32, i32) {
    %c0_i32 = arith.constant 0 : i32
    %c0_i32_0 = arith.constant 0 : i32
    %c0_i32_1 = arith.constant 0 : i32
    return %c0_i32, %c0_i32_0 : i32, i32
  }
  func.func @transform_3(%arg0: i32) -> (i32, i32) {
    %c0_i32 = arith.constant 0 : i32
    %c0_i32_0 = arith.constant 0 : i32
    %c0_i32_1 = arith.constant 0 : i32
    return %c0_i32, %c0_i32_0 : i32, i32
  }
  func.func @transform_4(%arg0: i32) -> (i32, i32) {
    %c0_i32 = arith.constant 0 : i32
    %c0_i32_0 = arith.constant 0 : i32
    return %arg0, %c0_i32 : i32, i32
  }
}

</mosaic_0001>

<llo_original>
// kernel: tpu_custom_call.1
$region0: #{tpu_custom_call.1}
  #allocation0 [shape = 'u32[]', space=smem, size = 0x4, offset = 0x4, fixed_abs, tag = 'smem constant byte address 0x4 - core index']
  #allocation1 [shape = 'u32[144,128]{1,0:T(1,128)}', space=vmem, size = 0x12000, scoped, tag = 'internal scratch']
  %s0 = inlined_call_operand.vmem [shape: f32[8,512], index: 0, kind: input, shape index: {}]
  %s1 = inlined_call_operand.vmem [shape: f32[256,8], index: 1, kind: input, shape index: {}]
  %s2 = inlined_call_operand.vmem [shape: f32[1,512], index: 2, kind: input, shape index: {}]
  %s3 = inlined_call_operand.vmem [shape: f32[1,512], index: 3, kind: input, shape index: {}]
  %s4 = inlined_call_operand.hbm [shape: f32[256,512], index: 4, kind: output, shape index: {}]
  %s5 = sld [smem:[#allocation0]]
  $region49: #{tpu_custom_call.1} parent=0
    _
  %s7 = ssub.s32 1, %s5
  %s8 = scalar_select 0, %s7, %s5
  $region1: #{tpu_custom_call.1} parent=0
    #allocation2 [shape = 'u8[524288]{0}', space=vmem, size = 0x80000, scoped, tag = 'output window, operand 0']
    #allocation3 [shape = 's32[2]{0}', space=sflag, size = 0x8, scoped, tag = 'scoped memory for tpu_custom_call.1']
    %9 = vsyncpa [#allocation3], 0
    %s10 = scalar_lea.sflag [#allocation3], 1
    %11 = vsyncpa %s10, 0
    loop: start=0, step=1, limit=4
    $region2: #{tpu_custom_call.1} parent=1 // loop_pre_header
      _
    $region3: #{tpu_custom_call.1} parent=1 // loop_header
      %s13 = sphi 0, %s17
      %p14 = scmp.ge.s32.totalorder %s13, 4
      %s21 = sphi 0, %s21
      %s23 = sphi 0, %s21
      %s24 = sphi 0, %s23
      %s38 = sphi 0, %s24
      %s44 = sphi 0, %s46
      %s47 = sphi 0, %s44
      %s48 = sphi 0, %s47
      %s64 = sphi 0, %s48
      %s68 = sphi 0, %s68
      %s70 = sphi 0, %s68
      %s71 = sphi 0, %s70
      %s85 = sphi 0, %s71
      %s89 = sphi 0, %s89
      %s91 = sphi 0, %s89
      %s92 = sphi 0, %s91
      %s106 = sphi 0, %s92
      %s112 = sphi 0, %s114
      %s115 = sphi 0, %s112
      %s116 = sphi 0, %s115
      %s132 = sphi 0, %s116
    $region4: #{tpu_custom_call.1} parent=1 // loop_header_branch
      %16 = sbr.rel (%p14) target = $region8
    $region5: #{tpu_custom_call.1} parent=1 // loop_body
      %s18 = ssub.s32 %s13, 1
      %s19 = ssub.s32 %s13, 2
      %s20 = sadd.s32 %s13, 1
      %s22 = sadd.s32 %s21, 1
      %p25 = scmp.eq.s32.totalorder %s13, 1
      %p26 = scmp.ne.s32.totalorder %s21, %s23
      %p27 = scmp.eq.s32.totalorder %s13, 0
      %p28 = por %p26, %p27
      %p29 = scmp.ne.s32.totalorder %s21, %s23
      %p30 = scmp.eq.s32.totalorder %s18, 1
      %p31 = por %p29, %p30
      %p32 = scmp.ne.s32.totalorder %s23, %s24
      %p33 = scmp.eq.s32.totalorder %s18, 0
      %p34 = por %p32, %p33
      %p35 = scmp.ne.s32.totalorder %s23, %s24
      %p36 = scmp.eq.s32.totalorder %s19, 1
      %p37 = por %p35, %p36
      %p39 = scmp.ne.s32.totalorder %s24, %s38
      %p40 = scmp.eq.s32.totalorder %s19, 0
      %p41 = por %p39, %p40
      %s42 = ssub.s32 %s13, %s20
      %p43 = scmp.eq.s32.totalorder %s42, 0
      %s45 = sadd.s32 %s44, 1
      %s46 = scalar_select %p43, %s44, %s45
      %p49 = pneg %p43
      %p50 = scmp.eq.s32.totalorder %s13, 1
      %p51 = por %p49, %p50
      %p52 = scmp.ne.s32.totalorder %s44, %s47
      %p53 = scmp.eq.s32.totalorder %s13, 0
      %p54 = por %p52, %p53
      %p55 = scmp.ne.s32.totalorder %s44, %s47
      %p56 = scmp.eq.s32.totalorder %s18, 1
      %p57 = por %p55, %p56
      %p58 = scmp.ne.s32.totalorder %s47, %s48
      %p59 = scmp.eq.s32.totalorder %s18, 0
      %p60 = por %p58, %p59
      %p61 = scmp.ne.s32.totalorder %s47, %s48
      %p62 = scmp.eq.s32.totalorder %s19, 1
      %p63 = por %p61, %p62
      %p65 = scmp.ne.s32.totalorder %s48, %s64
      %p66 = scmp.eq.s32.totalorder %s19, 0
      %p67 = por %p65, %p66
      %s69 = sadd.s32 %s68, 1
      %p72 = scmp.eq.s32.totalorder %s13, 1
      %p73 = scmp.ne.s32.totalorder %s68, %s70
      %p74 = scmp.eq.s32.totalorder %s13, 0
      %p75 = por %p73, %p74
      %p76 = scmp.ne.s32.totalorder %s68, %s70
      %p77 = scmp.eq.s32.totalorder %s18, 1
      %p78 = por %p76, %p77
      %p79 = scmp.ne.s32.totalorder %s70, %s71
      %p80 = scmp.eq.s32.totalorder %s18, 0
      %p81 = por %p79, %p80
      %p82 = scmp.ne.s32.totalorder %s70, %s71
      %p83 = scmp.eq.s32.totalorder %s19, 1
      %p84 = por %p82, %p83
      %p86 = scmp.ne.s32.totalorder %s71, %s85
      %p87 = scmp.eq.s32.totalorder %s19, 0
      %p88 = por %p86, %p87
      %s90 = sadd.s32 %s89, 1
      %p93 = scmp.eq.s32.totalorder %s13, 1
      %p94 = scmp.ne.s32.totalorder %s89, %s91
      %p95 = scmp.eq.s32.totalorder %s13, 0
      %p96 = por %p94, %p95
      %p97 = scmp.ne.s32.totalorder %s89, %s91
      %p98 = scmp.eq.s32.totalorder %s18, 1
      %p99 = por %p97, %p98
      %p100 = scmp.ne.s32.totalorder %s91, %s92
      %p101 = scmp.eq.s32.totalorder %s18, 0
      %p102 = por %p100, %p101
      %p103 = scmp.ne.s32.totalorder %s91, %s92
      %p104 = scmp.eq.s32.totalorder %s19, 1
      %p105 = por %p103, %p104
      %p107 = scmp.ne.s32.totalorder %s92, %s106
      %p108 = scmp.eq.s32.totalorder %s19, 0
      %p109 = por %p107, %p108
      %s110 = ssub.s32 %s13, %s20
      %p111 = scmp.eq.s32.totalorder %s110, 0
      %s113 = sadd.s32 %s112, 1
      %s114 = scalar_select %p111, %s112, %s113
      %p117 = pneg %p111
      %p118 = scmp.eq.s32.totalorder %s13, 1
      %p119 = por %p117, %p118
      %p120 = scmp.ne.s32.totalorder %s112, %s115
      %p121 = scmp.eq.s32.totalorder %s13, 0
      %p122 = por %p120, %p121
      %p123 = scmp.ne.s32.totalorder %s112, %s115
      %p124 = scmp.eq.s32.totalorder %s18, 1
      %p125 = por %p123, %p124
      %p126 = scmp.ne.s32.totalorder %s115, %s116
      %p127 = scmp.eq.s32.totalorder %s18, 0
      %p128 = por %p126, %p127
      %p129 = scmp.ne.s32.totalorder %s115, %s116
      %p130 = scmp.eq.s32.totalorder %s19, 1
      %p131 = por %p129, %p130
      %p133 = scmp.ne.s32.totalorder %s116, %s132
      %p134 = scmp.eq.s32.totalorder %s19, 0
      %p135 = por %p133, %p134
      %p136 = scmp.le.s32.totalorder 1, %s13
      %p137 = scmp.lt.s32.totalorder %s13, 3
      %p138 = pnand %p136, %p137
      %p139 = pneg %p138
      // Predicated region
      $region9: #{tpu_custom_call.1} parent=5 // pred_check
        _
      $region10: #{tpu_custom_call.1} parent=5 // pred_check_branch
        %141 = sbr.rel (%p138) target = $region12
      $region11: #{tpu_custom_call.1} parent=5 // pred_region
        %s142 = ssub.s32 %s13, 1
        // Predicated region
        $region13: #{tpu_custom_call.1} parent=11 // pred_check
          %p143 = pneg %p34
        $region14: #{tpu_custom_call.1} parent=11 // pred_check_branch
          %145 = sbr.rel (%p143) target = $region16
        $region15: #{tpu_custom_call.1} parent=11 // pred_region
          _
        $region16: #{tpu_custom_call.1} parent=11 // pred_fallthru
          _
        // Predicated region
        $region17: #{tpu_custom_call.1} parent=11 // pred_check
          %p146 = pneg %p81
        $region18: #{tpu_custom_call.1} parent=11 // pred_check_branch
          %148 = sbr.rel (%p146) target = $region20
        $region19: #{tpu_custom_call.1} parent=11 // pred_region
          _
        $region20: #{tpu_custom_call.1} parent=11 // pred_fallthru
          _
        // Predicated region
        $region21: #{tpu_custom_call.1} parent=11 // pred_check
          %p149 = pneg %p102
        $region22: #{tpu_custom_call.1} parent=11 // pred_check_branch
          %151 = sbr.rel (%p149) target = $region24
        $region23: #{tpu_custom_call.1} parent=11 // pred_region
          _
        $region24: #{tpu_custom_call.1} parent=11 // pred_fallthru
          _
      $region12: #{tpu_custom_call.1} parent=5 // pred_fallthru
        _
      %p152 = scmp.lt.s32.totalorder %s13, 2
      // Predicated region
      $region25: #{tpu_custom_call.1} parent=5 // pred_check
        %p153 = pneg %p152
      $region26: #{tpu_custom_call.1} parent=5 // pred_check_branch
        %155 = sbr.rel (%p153) target = $region28
      $region27: #{tpu_custom_call.1} parent=5 // pred_region
        // Predicated region
        $region29: #{tpu_custom_call.1} parent=27 // pred_check
          %p156 = pneg %p54
        $region30: #{tpu_custom_call.1} parent=27 // pred_check_branch
          %158 = sbr.rel (%p156) target = $region32
        $region31: #{tpu_custom_call.1} parent=27 // pred_region
          %s159 = smul.u32 16, %s13
          %p160 = scmp.lt.s32.totalorder %s159, 31
          %s161 = scalar_select %p160, %s159, 31
          %s162 = smul.addr %s161, 8
          %s163 = scalar_lea.vmem %s1, %s162
          %s164 = smul.u32 16, %s13
        $region32: #{tpu_custom_call.1} parent=27 // pred_fallthru
          _
      $region28: #{tpu_custom_call.1} parent=5 // pred_fallthru
        _
      %p165 = scmp.le.s32.totalorder 1, %s13
      %p166 = scmp.lt.s32.totalorder %s13, 3
      %p167 = pnand %p165, %p166
      %p168 = pneg %p167
      // Predicated region
      $region33: #{tpu_custom_call.1} parent=5 // pred_check
        _
      $region34: #{tpu_custom_call.1} parent=5 // pred_check_branch
        %170 = sbr.rel (%p167) target = $region36
      $region35: #{tpu_custom_call.1} parent=5 // pred_region
        %s171 = ssub.s32 %s13, 1
        %p172 = pneg %p34
        %p173 = pneg %p31
        %s174 = smul.u32 16, %s18
        %p175 = scmp.lt.s32.totalorder %s174, 31
        %s176 = scalar_select %p175, %s174, 31
        %s177 = smul.addr %s176, 8
        %s178 = scalar_lea.vmem %s1, %s177
        %p179 = pneg %p60
        %p180 = pneg %p57
        %p181 = pneg %p81
        %p182 = pneg %p78
        %p183 = pneg %p102
        %p184 = pneg %p99
        %p185 = pneg %p128
        %p186 = pneg %p125
        %s187 = sand.u32 %s115, 1
        %s188 = scalar_lea.sflag [#allocation3], %s187
        %s189 = sand.u32 %s115, 1
        %s190 = smul.addr %s189, 512
        %s191 = scalar_lea.vmem [#allocation2], %s190
        %s192 = smul.u32 16, %s18
        %p193 = scmp.lt.s32.totalorder %s192, 31
        %s194 = scalar_select %p193, %s192, 31
        %s195 = smul.addr %s194, 8
        %s196 = scalar_lea.vmem %s1, %s195
        %s197 = smul.u32 16, %s18
        %s198 = smul.u32 16, %s18
        %v199 = vld [vmem:[%s196] sm:$0xff]
        %v200 = vld [vmem:[%s196 + $0x8] sm:$0xff]
        %v201 = vld [vmem:[%s196 + $0x10] sm:$0xff]
        %v202 = vld [vmem:[%s196 + $0x18] sm:$0xff]
        %v203 = vld [vmem:[%s196 + $0x20] sm:$0xff]
        %v204 = vld [vmem:[%s196 + $0x28] sm:$0xff]
        %v205 = vld [vmem:[%s196 + $0x30] sm:$0xff]
        %v206 = vld [vmem:[%s196 + $0x38] sm:$0xff]
        %v207 = vld [vmem:[%s196 + $0x40] sm:$0xff]
        %v208 = vld [vmem:[%s196 + $0x48] sm:$0xff]
        %v209 = vld [vmem:[%s196 + $0x50] sm:$0xff]
        %v210 = vld [vmem:[%s196 + $0x58] sm:$0xff]
        %v211 = vld [vmem:[%s196 + $0x60] sm:$0xff]
        %v212 = vld [vmem:[%s196 + $0x68] sm:$0xff]
        %v213 = vld [vmem:[%s196 + $0x70] sm:$0xff]
        %v214 = vld [vmem:[%s196 + $0x78] sm:$0xff]
        %v215 = vld [vmem:[%s0] sm:$0xff]
        %v216 = vld [vmem:[%s0 + $0x8] sm:$0xff]
        %v217 = vld [vmem:[%s0 + $0x10] sm:$0xff]
        %v218 = vld [vmem:[%s0 + $0x18] sm:$0xff]
        %vm219 = vcmask 64512
        %v221 = vsel %vm219, %v199, 0
        %v224 = vsel %vm219, %v200, 0
        %v227 = vsel %vm219, %v201, 0
        %v230 = vsel %vm219, %v202, 0
        %v233 = vsel %vm219, %v203, 0
        %v236 = vsel %vm219, %v204, 0
        %v239 = vsel %vm219, %v205, 0
        %v242 = vsel %vm219, %v206, 0
        %v245 = vsel %vm219, %v207, 0
        %v248 = vsel %vm219, %v208, 0
        %v251 = vsel %vm219, %v209, 0
        %v254 = vsel %vm219, %v210, 0
        %v257 = vsel %vm219, %v211, 0
        %v260 = vsel %vm219, %v212, 0
        %v263 = vsel %vm219, %v213, 0
        %v266 = vsel %vm219, %v214, 0
        %268 = vmatprep.subr.mxu0 0.0
        %269 = vmatpush1.msra.mxu0 0.0
        %270 = vmatprep.subr.mxu0 0.0
        %271 = vmatpush1.msra.mxu0 0.0
        %272 = vmatprep.subr.mxu0 0.0
        %273 = vmatpush1.msra.mxu0 0.0
        %274 = vmatprep.subr.mxu0 0.0
        %275 = vmatpush1.msra.mxu0 0.0
        %276 = vmatprep.subr.mxu0 0.0
        %277 = vmatpush1.msra.mxu0 0.0
        %278 = vmatprep.subr.mxu0 0.0
        %279 = vmatpush1.msra.mxu0 0.0
        %280 = vmatprep.subr.mxu0 0.0
        %281 = vmatpush1.msra.mxu0 0.0
        %282 = vmatprep.subr.mxu0 0.0
        %283 = vmatpush1.msra.mxu0 0.0
        %284 = vmatprep.subr.mxu0 0.0
        %285 = vmatpush1.msra.mxu0 0.0
        %286 = vmatprep.subr.mxu0 0.0
        %287 = vmatpush1.msra.mxu0 0.0
        %288 = vmatprep.subr.mxu0 0.0
        %289 = vmatpush1.msra.mxu0 0.0
        %290 = vmatprep.subr.mxu0 0.0
        %291 = vmatpush1.msra.mxu0 0.0
        %292 = vmatprep.subr.mxu0 0.0
        %293 = vmatpush1.msra.mxu0 0.0
        %294 = vmatprep.subr.mxu0 0.0
        %295 = vmatpush1.msra.mxu0 0.0
        %296 = vmatprep.subr.mxu0 0.0
        %297 = vmatpush1.msra.mxu0 0.0
        %298 = vmatprep.subr.mxu0 %v216
        %299 = vmatpush1.msra.mxu0 %v215
        %300 = vmatprep.subr.mxu0 0.0
        %301 = vmatpush2.msra.mxu0 0.0
        %302 = vmatprep.subr.mxu0 0.0
        %303 = vmatpush2.msra.mxu0 0.0
        %304 = vmatprep.subr.mxu0 0.0
        %305 = vmatpush2.msra.mxu0 0.0
        %306 = vmatprep.subr.mxu0 0.0
        %307 = vmatpush2.msra.mxu0 0.0
        %308 = vmatprep.subr.mxu0 0.0
        %309 = vmatpush2.msra.mxu0 0.0
        %310 = vmatprep.subr.mxu0 0.0
        %311 = vmatpush2.msra.mxu0 0.0
        %312 = vmatprep.subr.mxu0 0.0
        %313 = vmatpush2.msra.mxu0 0.0
        %314 = vmatprep.subr.mxu0 0.0
        %315 = vmatpush2.msra.mxu0 0.0
        %316 = vmatprep.subr.mxu0 0.0
        %317 = vmatpush2.msra.mxu0 0.0
        %318 = vmatprep.subr.mxu0 0.0
        %319 = vmatpush2.msra.mxu0 0.0
        %320 = vmatprep.subr.mxu0 0.0
        %321 = vmatpush2.msra.mxu0 0.0
        %322 = vmatprep.subr.mxu0 0.0
        %323 = vmatpush2.msra.mxu0 0.0
        %324 = vmatprep.subr.mxu0 0.0
        %325 = vmatpush2.msra.mxu0 0.0
        %326 = vmatprep.subr.mxu0 0.0
        %327 = vmatpush2.msra.mxu0 0.0
        %328 = vmatprep.subr.mxu0 0.0
        %329 = vmatpush2.msra.mxu0 0.0
        %330 = vmatprep.subr.mxu0 0.0
        %331 = vmatpush2.msra.mxu0 0.0
        %332 = vmatprep.mubr.f32.mxu0 0.0
        %333 = vmatmul.mubr.f32.gmra.mxu0 %v221
        %v334 = vpop.f32.mrf.mxu0
        %v335 = vadd.f32 0.0, %v334
        %v336 = vpop.f32.mrf.mxu0
        %v337 = vadd.f32 0.0, %v336
        %338 = vmatprep.mubr.f32.mxu0 0.0
        %339 = vmatmul.mubr.f32.gmra.mxu0 %v224
        %v340 = vpop.f32.mrf.mxu0
        %v341 = vadd.f32 0.0, %v340
        %v342 = vpop.f32.mrf.mxu0
        %v343 = vadd.f32 0.0, %v342
        %344 = vmatprep.mubr.f32.mxu0 0.0
        %345 = vmatmul.mubr.f32.gmra.mxu0 %v227
        %v346 = vpop.f32.mrf.mxu0
        %v347 = vadd.f32 0.0, %v346
        %v348 = vpop.f32.mrf.mxu0
        %v349 = vadd.f32 0.0, %v348
        %350 = vmatprep.mubr.f32.mxu0 0.0
        %351 = vmatmul.mubr.f32.gmra.mxu0 %v230
        %v352 = vpop.f32.mrf.mxu0
        %v353 = vadd.f32 0.0, %v352
        %v354 = vpop.f32.mrf.mxu0
        %v355 = vadd.f32 0.0, %v354
        %356 = vmatprep.mubr.f32.mxu0 0.0
        %357 = vmatmul.mubr.f32.gmra.mxu0 %v233
        %v358 = vpop.f32.mrf.mxu0
        %v359 = vadd.f32 0.0, %v358
        %v360 = vpop.f32.mrf.mxu0
        %v361 = vadd.f32 0.0, %v360
        %362 = vmatprep.mubr.f32.mxu0 0.0
        %363 = vmatmul.mubr.f32.gmra.mxu0 %v236
        %v364 = vpop.f32.mrf.mxu0
        %v365 = vadd.f32 0.0, %v364
        %v366 = vpop.f32.mrf.mxu0
        %v367 = vadd.f32 0.0, %v366
        %368 = vmatprep.mubr.f32.mxu0 0.0
        %369 = vmatmul.mubr.f32.gmra.mxu0 %v239
        %v370 = vpop.f32.mrf.mxu0
        %v371 = vadd.f32 0.0, %v370
        %v372 = vpop.f32.mrf.mxu0
        %v373 = vadd.f32 0.0, %v372
        %374 = vmatprep.mubr.f32.mxu0 0.0
        %375 = vmatmul.mubr.f32.gmra.mxu0 %v242
        %v376 = vpop.f32.mrf.mxu0
        %v377 = vadd.f32 0.0, %v376
        %v378 = vpop.f32.mrf.mxu0
        %v379 = vadd.f32 0.0, %v378
        %380 = vmatprep.mubr.f32.mxu0 0.0
        %381 = vmatmul.mubr.f32.gmra.mxu0 %v245
        %v382 = vpop.f32.mrf.mxu0
        %v383 = vadd.f32 0.0, %v382
        %v384 = vpop.f32.mrf.mxu0
        %v385 = vadd.f32 0.0, %v384
        %386 = vmatprep.mubr.f32.mxu0 0.0
        %387 = vmatmul.mubr.f32.gmra.mxu0 %v248
        %v388 = vpop.f32.mrf.mxu0
        %v389 = vadd.f32 0.0, %v388
        %v390 = vpop.f32.mrf.mxu0
        %v391 = vadd.f32 0.0, %v390
        %392 = vmatprep.mubr.f32.mxu0 0.0
        %393 = vmatmul.mubr.f32.gmra.mxu0 %v251
        %v394 = vpop.f32.mrf.mxu0
        %v395 = vadd.f32 0.0, %v394
        %v396 = vpop.f32.mrf.mxu0
        %v397 = vadd.f32 0.0, %v396
        %398 = vmatprep.mubr.f32.mxu0 0.0
        %399 = vmatmul.mubr.f32.gmra.mxu0 %v254
        %v400 = vpop.f32.mrf.mxu0
        %v401 = vadd.f32 0.0, %v400
        %v402 = vpop.f32.mrf.mxu0
        %v403 = vadd.f32 0.0, %v402
        %404 = vmatprep.mubr.f32.mxu0 0.0
        %405 = vmatmul.mubr.f32.gmra.mxu0 %v257
        %v406 = vpop.f32.mrf.mxu0
        %v407 = vadd.f32 0.0, %v406
        %v408 = vpop.f32.mrf.mxu0
        %v409 = vadd.f32 0.0, %v408
        %410 = vmatprep.mubr.f32.mxu0 0.0
        %411 = vmatmul.mubr.f32.gmra.mxu0 %v260
        %v412 = vpop.f32.mrf.mxu0
        %v413 = vadd.f32 0.0, %v412
        %v414 = vpop.f32.mrf.mxu0
        %v415 = vadd.f32 0.0, %v414
        %416 = vmatprep.mubr.f32.mxu0 0.0
        %417 = vmatmul.mubr.f32.gmra.mxu0 %v263
        %v418 = vpop.f32.mrf.mxu0
        %v419 = vadd.f32 0.0, %v418
        %v420 = vpop.f32.mrf.mxu0
        %v421 = vadd.f32 0.0, %v420
        %422 = vmatprep.mubr.f32.mxu0 0.0
        %423 = vmatmul.mubr.f32.gmra.mxu0 %v266
        %v424 = vpop.f32.mrf.mxu0
        %v425 = vadd.f32 0.0, %v424
        %v426 = vpop.f32.mrf.mxu0
        %v427 = vadd.f32 0.0, %v426
        %428 = vdwg.mxu0
        %429 = vmatprep.subr.mxu0 0.0
        %430 = vmatpush1.msra.mxu0 0.0
        %431 = vmatprep.subr.mxu0 0.0
        %432 = vmatpush1.msra.mxu0 0.0
        %433 = vmatprep.subr.mxu0 0.0
        %434 = vmatpush1.msra.mxu0 0.0
        %435 = vmatprep.subr.mxu0 0.0
        %436 = vmatpush1.msra.mxu0 0.0
        %437 = vmatprep.subr.mxu0 0.0
        %438 = vmatpush1.msra.mxu0 0.0
        %439 = vmatprep.subr.mxu0 0.0
        %440 = vmatpush1.msra.mxu0 0.0
        %441 = vmatprep.subr.mxu0 0.0
        %442 = vmatpush1.msra.mxu0 0.0
        %443 = vmatprep.subr.mxu0 0.0
        %444 = vmatpush1.msra.mxu0 0.0
        %445 = vmatprep.subr.mxu0 0.0
        %446 = vmatpush1.msra.mxu0 0.0
        %447 = vmatprep.subr.mxu0 0.0
        %448 = vmatpush1.msra.mxu0 0.0
        %449 = vmatprep.subr.mxu0 0.0
        %450 = vmatpush1.msra.mxu0 0.0
        %451 = vmatprep.subr.mxu0 0.0
        %452 = vmatpush1.msra.mxu0 0.0
        %453 = vmatprep.subr.mxu0 0.0
        %454 = vmatpush1.msra.mxu0 0.0
        %455 = vmatprep.subr.mxu0 0.0
        %456 = vmatpush1.msra.mxu0 0.0
        %457 = vmatprep.subr.mxu0 0.0
        %458 = vmatpush1.msra.mxu0 0.0
        %459 = vmatprep.subr.mxu0 %v218
        %460 = vmatpush1.msra.mxu0 %v217
        %461 = vmatprep.subr.mxu0 0.0
        %462 = vmatpush2.msra.mxu0 0.0
        %463 = vmatprep.subr.mxu0 0.0
        %464 = vmatpush2.msra.mxu0 0.0
        %465 = vmatprep.subr.mxu0 0.0
        %466 = vmatpush2.msra.mxu0 0.0
        %467 = vmatprep.subr.mxu0 0.0
        %468 = vmatpush2.msra.mxu0 0.0
        %469 = vmatprep.subr.mxu0 0.0
        %470 = vmatpush2.msra.mxu0 0.0
        %471 = vmatprep.subr.mxu0 0.0
        %472 = vmatpush2.msra.mxu0 0.0
        %473 = vmatprep.subr.mxu0 0.0
        %474 = vmatpush2.msra.mxu0 0.0
        %475 = vmatprep.subr.mxu0 0.0
        %476 = vmatpush2.msra.mxu0 0.0
        %477 = vmatprep.subr.mxu0 0.0
        %478 = vmatpush2.msra.mxu0 0.0
        %479 = vmatprep.subr.mxu0 0.0
        %480 = vmatpush2.msra.mxu0 0.0
        %481 = vmatprep.subr.mxu0 0.0
        %482 = vmatpush2.msra.mxu0 0.0
        %483 = vmatprep.subr.mxu0 0.0
        %484 = vmatpush2.msra.mxu0 0.0
        %485 = vmatprep.subr.mxu0 0.0
        %486 = vmatpush2.msra.mxu0 0.0
        %487 = vmatprep.subr.mxu0 0.0
        %488 = vmatpush2.msra.mxu0 0.0
        %489 = vmatprep.subr.mxu0 0.0
        %490 = vmatpush2.msra.mxu0 0.0
        %491 = vmatprep.subr.mxu0 0.0
        %492 = vmatpush2.msra.mxu0 0.0
        %493 = vmatprep.mubr.f32.mxu0 0.0
        %494 = vmatmul.mubr.f32.gmra.mxu0 %v221
        %v495 = vpop.f32.mrf.mxu0
        %v496 = vadd.f32 0.0, %v495
        %v497 = vpop.f32.mrf.mxu0
        %v498 = vadd.f32 0.0, %v497
        %499 = vmatprep.mubr.f32.mxu0 0.0
        %500 = vmatmul.mubr.f32.gmra.mxu0 %v224
        %v501 = vpop.f32.mrf.mxu0
        %v502 = vadd.f32 0.0, %v501
        %v503 = vpop.f32.mrf.mxu0
        %v504 = vadd.f32 0.0, %v503
        %505 = vmatprep.mubr.f32.mxu0 0.0
        %506 = vmatmul.mubr.f32.gmra.mxu0 %v227
        %v507 = vpop.f32.mrf.mxu0
        %v508 = vadd.f32 0.0, %v507
        %v509 = vpop.f32.mrf.mxu0
        %v510 = vadd.f32 0.0, %v509
        %511 = vmatprep.mubr.f32.mxu0 0.0
        %512 = vmatmul.mubr.f32.gmra.mxu0 %v230
        %v513 = vpop.f32.mrf.mxu0
        %v514 = vadd.f32 0.0, %v513
        %v515 = vpop.f32.mrf.mxu0
        %v516 = vadd.f32 0.0, %v515
        %517 = vmatprep.mubr.f32.mxu0 0.0
        %518 = vmatmul.mubr.f32.gmra.mxu0 %v233
        %v519 = vpop.f32.mrf.mxu0
        %v520 = vadd.f32 0.0, %v519
        %v521 = vpop.f32.mrf.mxu0
        %v522 = vadd.f32 0.0, %v521
        %523 = vmatprep.mubr.f32.mxu0 0.0
        %524 = vmatmul.mubr.f32.gmra.mxu0 %v236
        %v525 = vpop.f32.mrf.mxu0
        %v526 = vadd.f32 0.0, %v525
        %v527 = vpop.f32.mrf.mxu0
        %v528 = vadd.f32 0.0, %v527
        %529 = vmatprep.mubr.f32.mxu0 0.0
        %530 = vmatmul.mubr.f32.gmra.mxu0 %v239
        %v531 = vpop.f32.mrf.mxu0
        %v532 = vadd.f32 0.0, %v531
        %v533 = vpop.f32.mrf.mxu0
        %v534 = vadd.f32 0.0, %v533
        %535 = vmatprep.mubr.f32.mxu0 0.0
        %536 = vmatmul.mubr.f32.gmra.mxu0 %v242
        %v537 = vpop.f32.mrf.mxu0
        %v538 = vadd.f32 0.0, %v537
        %v539 = vpop.f32.mrf.mxu0
        %v540 = vadd.f32 0.0, %v539
        %541 = vmatprep.mubr.f32.mxu0 0.0
        %542 = vmatmul.mubr.f32.gmra.mxu0 %v245
        %v543 = vpop.f32.mrf.mxu0
        %v544 = vadd.f32 0.0, %v543
        %v545 = vpop.f32.mrf.mxu0
        %v546 = vadd.f32 0.0, %v545
        %547 = vmatprep.mubr.f32.mxu0 0.0
        %548 = vmatmul.mubr.f32.gmra.mxu0 %v248
        %v549 = vpop.f32.mrf.mxu0
        %v550 = vadd.f32 0.0, %v549
        %v551 = vpop.f32.mrf.mxu0
        %v552 = vadd.f32 0.0, %v551
        %553 = vmatprep.mubr.f32.mxu0 0.0
        %554 = vmatmul.mubr.f32.gmra.mxu0 %v251
        %v555 = vpop.f32.mrf.mxu0
        %v556 = vadd.f32 0.0, %v555
        %v557 = vpop.f32.mrf.mxu0
        %v558 = vadd.f32 0.0, %v557
        %559 = vmatprep.mubr.f32.mxu0 0.0
        %560 = vmatmul.mubr.f32.gmra.mxu0 %v254
        %v561 = vpop.f32.mrf.mxu0
        %v562 = vadd.f32 0.0, %v561
        %v563 = vpop.f32.mrf.mxu0
        %v564 = vadd.f32 0.0, %v563
        %565 = vmatprep.mubr.f32.mxu0 0.0
        %566 = vmatmul.mubr.f32.gmra.mxu0 %v257
        %v567 = vpop.f32.mrf.mxu0
        %v568 = vadd.f32 0.0, %v567
        %v569 = vpop.f32.mrf.mxu0
        %v570 = vadd.f32 0.0, %v569
        %571 = vmatprep.mubr.f32.mxu0 0.0
        %572 = vmatmul.mubr.f32.gmra.mxu0 %v260
        %v573 = vpop.f32.mrf.mxu0
        %v574 = vadd.f32 0.0, %v573
        %v575 = vpop.f32.mrf.mxu0
        %v576 = vadd.f32 0.0, %v575
        %577 = vmatprep.mubr.f32.mxu0 0.0
        %578 = vmatmul.mubr.f32.gmra.mxu0 %v263
        %v579 = vpop.f32.mrf.mxu0
        %v580 = vadd.f32 0.0, %v579
        %v581 = vpop.f32.mrf.mxu0
        %v582 = vadd.f32 0.0, %v581
        %583 = vmatprep.mubr.f32.mxu0 0.0
        %584 = vmatmul.mubr.f32.gmra.mxu0 %v266
        %v585 = vpop.f32.mrf.mxu0
        %v586 = vadd.f32 0.0, %v585
        %v587 = vpop.f32.mrf.mxu0
        %v588 = vadd.f32 0.0, %v587
        %589 = vdwg.mxu0
        %590 = vmatprep.subr.mxu0 0.0
        %591 = vmatpush1.msra.mxu0 1.0
        %592 = vmatprep.subr.mxu0 0.0
        %593 = vmatpush1.msra.mxu0 1.0
        %594 = vmatprep.subr.mxu0 0.0
        %595 = vmatpush1.msra.mxu0 1.0
        %596 = vmatprep.subr.mxu0 0.0
        %597 = vmatpush1.msra.mxu0 1.0
        %598 = vmatprep.subr.mxu0 0.0
        %599 = vmatpush1.msra.mxu0 1.0
        %600 = vmatprep.subr.mxu0 0.0
        %601 = vmatpush1.msra.mxu0 1.0
        %602 = vmatprep.subr.mxu0 0.0
        %603 = vmatpush1.msra.mxu0 1.0
        %604 = vmatprep.subr.mxu0 0.0
        %605 = vmatpush1.msra.mxu0 1.0
        %606 = vmatprep.subr.mxu0 0.0
        %607 = vmatpush1.msra.mxu0 1.0
        %608 = vmatprep.subr.mxu0 0.0
        %609 = vmatpush1.msra.mxu0 1.0
        %610 = vmatprep.subr.mxu0 0.0
        %611 = vmatpush1.msra.mxu0 1.0
        %612 = vmatprep.subr.mxu0 0.0
        %613 = vmatpush1.msra.mxu0 1.0
        %614 = vmatprep.subr.mxu0 0.0
        %615 = vmatpush1.msra.mxu0 1.0
        %616 = vmatprep.subr.mxu0 0.0
        %617 = vmatpush1.msra.mxu0 1.0
        %618 = vmatprep.subr.mxu0 0.0
        %619 = vmatpush1.msra.mxu0 1.0
        %620 = vmatprep.subr.mxu0 0.0
        %621 = vmatpush1.msra.mxu0 1.0
        %622 = vmatprep.subr.mxu0 0.0
        %623 = vmatpush2.msra.mxu0 1.0
        %624 = vmatprep.subr.mxu0 0.0
        %625 = vmatpush2.msra.mxu0 1.0
        %626 = vmatprep.subr.mxu0 0.0
        %627 = vmatpush2.msra.mxu0 1.0
        %628 = vmatprep.subr.mxu0 0.0
        %629 = vmatpush2.msra.mxu0 1.0
        %630 = vmatprep.subr.mxu0 0.0
        %631 = vmatpush2.msra.mxu0 1.0
        %632 = vmatprep.subr.mxu0 0.0
        %633 = vmatpush2.msra.mxu0 1.0
        %634 = vmatprep.subr.mxu0 0.0
        %635 = vmatpush2.msra.mxu0 1.0
        %636 = vmatprep.subr.mxu0 0.0
        %637 = vmatpush2.msra.mxu0 1.0
        %638 = vmatprep.subr.mxu0 0.0
        %639 = vmatpush2.msra.mxu0 1.0
        %640 = vmatprep.subr.mxu0 0.0
        %641 = vmatpush2.msra.mxu0 1.0
        %642 = vmatprep.subr.mxu0 0.0
        %643 = vmatpush2.msra.mxu0 1.0
        %644 = vmatprep.subr.mxu0 0.0
        %645 = vmatpush2.msra.mxu0 1.0
        %646 = vmatprep.subr.mxu0 0.0
        %647 = vmatpush2.msra.mxu0 1.0
        %648 = vmatprep.subr.mxu0 0.0
        %649 = vmatpush2.msra.mxu0 1.0
        %650 = vmatprep.subr.mxu0 0.0
        %651 = vmatpush2.msra.mxu0 1.0
        %652 = vmatprep.subr.mxu0 0.0
        %653 = vmatpush2.msra.mxu0 1.0
        %654 = vmatprep.mubr.f32.mxu0 %v337
        %655 = vmatmul.mubr.f32.gmra.mxu0 %v335
        %v656 = vpop.f32.mrf.mxu0
        %v657 = vadd.f32 0.0, %v656
        %v658 = vpop.f32.mrf.mxu0
        %659 = vmatprep.mubr.f32.mxu0 %v343
        %660 = vmatmul.mubr.f32.gmra.mxu0 %v341
        %v661 = vpop.f32.mrf.mxu0
        %v662 = vadd.f32 0.0, %v661
        %v663 = vpop.f32.mrf.mxu0
        %664 = vmatprep.mubr.f32.mxu0 %v349
        %665 = vmatmul.mubr.f32.gmra.mxu0 %v347
        %v666 = vpop.f32.mrf.mxu0
        %v667 = vadd.f32 0.0, %v666
        %v668 = vpop.f32.mrf.mxu0
        %669 = vmatprep.mubr.f32.mxu0 %v355
        %670 = vmatmul.mubr.f32.gmra.mxu0 %v353
        %v671 = vpop.f32.mrf.mxu0
        %v672 = vadd.f32 0.0, %v671
        %v673 = vpop.f32.mrf.mxu0
        %674 = vmatprep.mubr.f32.mxu0 %v361
        %675 = vmatmul.mubr.f32.gmra.mxu0 %v359
        %v676 = vpop.f32.mrf.mxu0
        %v677 = vadd.f32 0.0, %v676
        %v678 = vpop.f32.mrf.mxu0
        %679 = vmatprep.mubr.f32.mxu0 %v367
        %680 = vmatmul.mubr.f32.gmra.mxu0 %v365
        %v681 = vpop.f32.mrf.mxu0
        %v682 = vadd.f32 0.0, %v681
        %v683 = vpop.f32.mrf.mxu0
        %684 = vmatprep.mubr.f32.mxu0 %v373
        %685 = vmatmul.mubr.f32.gmra.mxu0 %v371
        %v686 = vpop.f32.mrf.mxu0
        %v687 = vadd.f32 0.0, %v686
        %v688 = vpop.f32.mrf.mxu0
        %689 = vmatprep.mubr.f32.mxu0 %v379
        %690 = vmatmul.mubr.f32.gmra.mxu0 %v377
        %v691 = vpop.f32.mrf.mxu0
        %v692 = vadd.f32 0.0, %v691
        %v693 = vpop.f32.mrf.mxu0
        %694 = vmatprep.mubr.f32.mxu0 %v385
        %695 = vmatmul.mubr.f32.gmra.mxu0 %v383
        %v696 = vpop.f32.mrf.mxu0
        %v697 = vadd.f32 0.0, %v696
        %v698 = vpop.f32.mrf.mxu0
        %699 = vmatprep.mubr.f32.mxu0 %v391
        %700 = vmatmul.mubr.f32.gmra.mxu0 %v389
        %v701 = vpop.f32.mrf.mxu0
        %v702 = vadd.f32 0.0, %v701
        %v703 = vpop.f32.mrf.mxu0
        %704 = vmatprep.mubr.f32.mxu0 %v397
        %705 = vmatmul.mubr.f32.gmra.mxu0 %v395
        %v706 = vpop.f32.mrf.mxu0
        %v707 = vadd.f32 0.0, %v706
        %v708 = vpop.f32.mrf.mxu0
        %709 = vmatprep.mubr.f32.mxu0 %v403
        %710 = vmatmul.mubr.f32.gmra.mxu0 %v401
        %v711 = vpop.f32.mrf.mxu0
        %v712 = vadd.f32 0.0, %v711
        %v713 = vpop.f32.mrf.mxu0
        %714 = vmatprep.mubr.f32.mxu0 %v409
        %715 = vmatmul.mubr.f32.gmra.mxu0 %v407
        %v716 = vpop.f32.mrf.mxu0
        %v717 = vadd.f32 0.0, %v716
        %v718 = vpop.f32.mrf.mxu0
        %719 = vmatprep.mubr.f32.mxu0 %v415
        %720 = vmatmul.mubr.f32.gmra.mxu0 %v413
        %v721 = vpop.f32.mrf.mxu0
        %v722 = vadd.f32 0.0, %v721
        %v723 = vpop.f32.mrf.mxu0
        %724 = vmatprep.mubr.f32.mxu0 %v421
        %725 = vmatmul.mubr.f32.gmra.mxu0 %v419
        %v726 = vpop.f32.mrf.mxu0
        %v727 = vadd.f32 0.0, %v726
        %v728 = vpop.f32.mrf.mxu0
        %729 = vmatprep.mubr.f32.mxu0 %v427
        %730 = vmatmul.mubr.f32.gmra.mxu0 %v425
        %v731 = vpop.f32.mrf.mxu0
        %v732 = vadd.f32 0.0, %v731
        %v733 = vpop.f32.mrf.mxu0
        %734 = vdwg.mxu0
        %735 = vmatprep.subr.mxu0 0.0
        %736 = vmatpush1.msra.mxu0 1.0
        %737 = vmatprep.subr.mxu0 0.0
        %738 = vmatpush1.msra.mxu0 1.0
        %739 = vmatprep.subr.mxu0 0.0
        %740 = vmatpush1.msra.mxu0 1.0
        %741 = vmatprep.subr.mxu0 0.0
        %742 = vmatpush1.msra.mxu0 1.0
        %743 = vmatprep.subr.mxu0 0.0
        %744 = vmatpush1.msra.mxu0 1.0
        %745 = vmatprep.subr.mxu0 0.0
        %746 = vmatpush1.msra.mxu0 1.0
        %747 = vmatprep.subr.mxu0 0.0
        %748 = vmatpush1.msra.mxu0 1.0
        %749 = vmatprep.subr.mxu0 0.0
        %750 = vmatpush1.msra.mxu0 1.0
        %751 = vmatprep.subr.mxu0 0.0
        %752 = vmatpush1.msra.mxu0 1.0
        %753 = vmatprep.subr.mxu0 0.0
        %754 = vmatpush1.msra.mxu0 1.0
        %755 = vmatprep.subr.mxu0 0.0
        %756 = vmatpush1.msra.mxu0 1.0
        %757 = vmatprep.subr.mxu0 0.0
        %758 = vmatpush1.msra.mxu0 1.0
        %759 = vmatprep.subr.mxu0 0.0
        %760 = vmatpush1.msra.mxu0 1.0
        %761 = vmatprep.subr.mxu0 0.0
        %762 = vmatpush1.msra.mxu0 1.0
        %763 = vmatprep.subr.mxu0 0.0
        %764 = vmatpush1.msra.mxu0 1.0
        %765 = vmatprep.subr.mxu0 0.0
        %766 = vmatpush1.msra.mxu0 1.0
        %767 = vmatprep.subr.mxu0 0.0
        %768 = vmatpush2.msra.mxu0 1.0
        %769 = vmatprep.subr.mxu0 0.0
        %770 = vmatpush2.msra.mxu0 1.0
        %771 = vmatprep.subr.mxu0 0.0
        %772 = vmatpush2.msra.mxu0 1.0
        %773 = vmatprep.subr.mxu0 0.0
        %774 = vmatpush2.msra.mxu0 1.0
        %775 = vmatprep.subr.mxu0 0.0
        %776 = vmatpush2.msra.mxu0 1.0
        %777 = vmatprep.subr.mxu0 0.0
        %778 = vmatpush2.msra.mxu0 1.0
        %779 = vmatprep.subr.mxu0 0.0
        %780 = vmatpush2.msra.mxu0 1.0
        %781 = vmatprep.subr.mxu0 0.0
        %782 = vmatpush2.msra.mxu0 1.0
        %783 = vmatprep.subr.mxu0 0.0
        %784 = vmatpush2.msra.mxu0 1.0
        %785 = vmatprep.subr.mxu0 0.0
        %786 = vmatpush2.msra.mxu0 1.0
        %787 = vmatprep.subr.mxu0 0.0
        %788 = vmatpush2.msra.mxu0 1.0
        %789 = vmatprep.subr.mxu0 0.0
        %790 = vmatpush2.msra.mxu0 1.0
        %791 = vmatprep.subr.mxu0 0.0
        %792 = vmatpush2.msra.mxu0 1.0
        %793 = vmatprep.subr.mxu0 0.0
        %794 = vmatpush2.msra.mxu0 1.0
        %795 = vmatprep.subr.mxu0 0.0
        %796 = vmatpush2.msra.mxu0 1.0
        %797 = vmatprep.subr.mxu0 0.0
        %798 = vmatpush2.msra.mxu0 1.0
        %799 = vmatprep.mubr.f32.mxu0 %v498
        %800 = vmatmul.mubr.f32.gmra.mxu0 %v496
        %v801 = vpop.f32.mrf.mxu0
        %v802 = vadd.f32 %v657, %v801
        %v803 = vpop.f32.mrf.mxu0
        %804 = vmatprep.mubr.f32.mxu0 %v504
        %805 = vmatmul.mubr.f32.gmra.mxu0 %v502
        %v806 = vpop.f32.mrf.mxu0
        %v807 = vadd.f32 %v662, %v806
        %v808 = vpop.f32.mrf.mxu0
        %809 = vmatprep.mubr.f32.mxu0 %v510
        %810 = vmatmul.mubr.f32.gmra.mxu0 %v508
        %v811 = vpop.f32.mrf.mxu0
        %v812 = vadd.f32 %v667, %v811
        %v813 = vpop.f32.mrf.mxu0
        %814 = vmatprep.mubr.f32.mxu0 %v516
        %815 = vmatmul.mubr.f32.gmra.mxu0 %v514
        %v816 = vpop.f32.mrf.mxu0
        %v817 = vadd.f32 %v672, %v816
        %v818 = vpop.f32.mrf.mxu0
        %819 = vmatprep.mubr.f32.mxu0 %v522
        %820 = vmatmul.mubr.f32.gmra.mxu0 %v520
        %v821 = vpop.f32.mrf.mxu0
        %v822 = vadd.f32 %v677, %v821
        %v823 = vpop.f32.mrf.mxu0
        %824 = vmatprep.mubr.f32.mxu0 %v528
        %825 = vmatmul.mubr.f32.gmra.mxu0 %v526
        %v826 = vpop.f32.mrf.mxu0
        %v827 = vadd.f32 %v682, %v826
        %v828 = vpop.f32.mrf.mxu0
        %829 = vmatprep.mubr.f32.mxu0 %v534
        %830 = vmatmul.mubr.f32.gmra.mxu0 %v532
        %v831 = vpop.f32.mrf.mxu0
        %v832 = vadd.f32 %v687, %v831
        %v833 = vpop.f32.mrf.mxu0
        %834 = vmatprep.mubr.f32.mxu0 %v540
        %835 = vmatmul.mubr.f32.gmra.mxu0 %v538
        %v836 = vpop.f32.mrf.mxu0
        %v837 = vadd.f32 %v692, %v836
        %v838 = vpop.f32.mrf.mxu0
        %839 = vmatprep.mubr.f32.mxu0 %v546
        %840 = vmatmul.mubr.f32.gmra.mxu0 %v544
        %v841 = vpop.f32.mrf.mxu0
        %v842 = vadd.f32 %v697, %v841
        %v843 = vpop.f32.mrf.mxu0
        %844 = vmatprep.mubr.f32.mxu0 %v552
        %845 = vmatmul.mubr.f32.gmra.mxu0 %v550
        %v846 = vpop.f32.mrf.mxu0
        %v847 = vadd.f32 %v702, %v846
        %v848 = vpop.f32.mrf.mxu0
        %849 = vmatprep.mubr.f32.mxu0 %v558
        %850 = vmatmul.mubr.f32.gmra.mxu0 %v556
        %v851 = vpop.f32.mrf.mxu0
        %v852 = vadd.f32 %v707, %v851
        %v853 = vpop.f32.mrf.mxu0
        %854 = vmatprep.mubr.f32.mxu0 %v564
        %855 = vmatmul.mubr.f32.gmra.mxu0 %v562
        %v856 = vpop.f32.mrf.mxu0
        %v857 = vadd.f32 %v712, %v856
        %v858 = vpop.f32.mrf.mxu0
        %859 = vmatprep.mubr.f32.mxu0 %v570
        %860 = vmatmul.mubr.f32.gmra.mxu0 %v568
        %v861 = vpop.f32.mrf.mxu0
        %v862 = vadd.f32 %v717, %v861
        %v863 = vpop.f32.mrf.mxu0
        %864 = vmatprep.mubr.f32.mxu0 %v576
        %865 = vmatmul.mubr.f32.gmra.mxu0 %v574
        %v866 = vpop.f32.mrf.mxu0
        %v867 = vadd.f32 %v722, %v866
        %v868 = vpop.f32.mrf.mxu0
        %869 = vmatprep.mubr.f32.mxu0 %v582
        %870 = vmatmul.mubr.f32.gmra.mxu0 %v580
        %v871 = vpop.f32.mrf.mxu0
        %v872 = vadd.f32 %v727, %v871
        %v873 = vpop.f32.mrf.mxu0
        %874 = vmatprep.mubr.f32.mxu0 %v588
        %875 = vmatmul.mubr.f32.gmra.mxu0 %v586
        %v876 = vpop.f32.mrf.mxu0
        %v877 = vadd.f32 %v732, %v876
        %v878 = vpop.f32.mrf.mxu0
        %879 = vdwg.mxu0
        %v880 = vmul.f32 %v335, %v335
        %v881 = vmul.f32 %v337, %v337
        %v882 = vmul.f32 %v496, %v496
        %v883 = vmul.f32 %v498, %v498
        %v884 = vmul.f32 %v341, %v341
        %v885 = vmul.f32 %v343, %v343
        %v886 = vmul.f32 %v502, %v502
        %v887 = vmul.f32 %v504, %v504
        %v888 = vmul.f32 %v347, %v347
        %v889 = vmul.f32 %v349, %v349
        %v890 = vmul.f32 %v508, %v508
        %v891 = vmul.f32 %v510, %v510
        %v892 = vmul.f32 %v353, %v353
        %v893 = vmul.f32 %v355, %v355
        %v894 = vmul.f32 %v514, %v514
        %v895 = vmul.f32 %v516, %v516
        %v896 = vmul.f32 %v359, %v359
        %v897 = vmul.f32 %v361, %v361
        %v898 = vmul.f32 %v520, %v520
        %v899 = vmul.f32 %v522, %v522
        %v900 = vmul.f32 %v365, %v365
        %v901 = vmul.f32 %v367, %v367
        %v902 = vmul.f32 %v526, %v526
        %v903 = vmul.f32 %v528, %v528
        %v904 = vmul.f32 %v371, %v371
        %v905 = vmul.f32 %v373, %v373
        %v906 = vmul.f32 %v532, %v532
        %v907 = vmul.f32 %v534, %v534
        %v908 = vmul.f32 %v377, %v377
        %v909 = vmul.f32 %v379, %v379
        %v910 = vmul.f32 %v538, %v538
        %v911 = vmul.f32 %v540, %v540
        %v912 = vmul.f32 %v383, %v383
        %v913 = vmul.f32 %v385, %v385
        %v914 = vmul.f32 %v544, %v544
        %v915 = vmul.f32 %v546, %v546
        %v916 = vmul.f32 %v389, %v389
        %v917 = vmul.f32 %v391, %v391
        %v918 = vmul.f32 %v550, %v550
        %v919 = vmul.f32 %v552, %v552
        %v920 = vmul.f32 %v395, %v395
        %v921 = vmul.f32 %v397, %v397
        %v922 = vmul.f32 %v556, %v556
        %v923 = vmul.f32 %v558, %v558
        %v924 = vmul.f32 %v401, %v401
        %v925 = vmul.f32 %v403, %v403
        %v926 = vmul.f32 %v562, %v562
        %v927 = vmul.f32 %v564, %v564
        %v928 = vmul.f32 %v407, %v407
        %v929 = vmul.f32 %v409, %v409
        %v930 = vmul.f32 %v568, %v568
        %v931 = vmul.f32 %v570, %v570
        %v932 = vmul.f32 %v413, %v413
        %v933 = vmul.f32 %v415, %v415
        %v934 = vmul.f32 %v574, %v574
        %v935 = vmul.f32 %v576, %v576
        %v936 = vmul.f32 %v419, %v419
        %v937 = vmul.f32 %v421, %v421
        %v938 = vmul.f32 %v580, %v580
        %v939 = vmul.f32 %v582, %v582
        %v940 = vmul.f32 %v425, %v425
        %v941 = vmul.f32 %v427, %v427
        %v942 = vmul.f32 %v586, %v586
        %v943 = vmul.f32 %v588, %v588
        %944 = vmatprep.subr.mxu0 0.0
        %945 = vmatpush1.msra.mxu0 1.0
        %946 = vmatprep.subr.mxu0 0.0
        %947 = vmatpush1.msra.mxu0 1.0
        %948 = vmatprep.subr.mxu0 0.0
        %949 = vmatpush1.msra.mxu0 1.0
        %950 = vmatprep.subr.mxu0 0.0
        %951 = vmatpush1.msra.mxu0 1.0
        %952 = vmatprep.subr.mxu0 0.0
        %953 = vmatpush1.msra.mxu0 1.0
        %954 = vmatprep.subr.mxu0 0.0
        %955 = vmatpush1.msra.mxu0 1.0
        %956 = vmatprep.subr.mxu0 0.0
        %957 = vmatpush1.msra.mxu0 1.0
        %958 = vmatprep.subr.mxu0 0.0
        %959 = vmatpush1.msra.mxu0 1.0
        %960 = vmatprep.subr.mxu0 0.0
        %961 = vmatpush1.msra.mxu0 1.0
        %962 = vmatprep.subr.mxu0 0.0
        %963 = vmatpush1.msra.mxu0 1.0
        %964 = vmatprep.subr.mxu0 0.0
        %965 = vmatpush1.msra.mxu0 1.0
        %966 = vmatprep.subr.mxu0 0.0
        %967 = vmatpush1.msra.mxu0 1.0
        %968 = vmatprep.subr.mxu0 0.0
        %969 = vmatpush1.msra.mxu0 1.0
        %970 = vmatprep.subr.mxu0 0.0
        %971 = vmatpush1.msra.mxu0 1.0
        %972 = vmatprep.subr.mxu0 0.0
        %973 = vmatpush1.msra.mxu0 1.0
        %974 = vmatprep.subr.mxu0 0.0
        %975 = vmatpush1.msra.mxu0 1.0
        %976 = vmatprep.subr.mxu0 0.0
        %977 = vmatpush2.msra.mxu0 1.0
        %978 = vmatprep.subr.mxu0 0.0
        %979 = vmatpush2.msra.mxu0 1.0
        %980 = vmatprep.subr.mxu0 0.0
        %981 = vmatpush2.msra.mxu0 1.0
        %982 = vmatprep.subr.mxu0 0.0
        %983 = vmatpush2.msra.mxu0 1.0
        %984 = vmatprep.subr.mxu0 0.0
        %985 = vmatpush2.msra.mxu0 1.0
        %986 = vmatprep.subr.mxu0 0.0
        %987 = vmatpush2.msra.mxu0 1.0
        %988 = vmatprep.subr.mxu0 0.0
        %989 = vmatpush2.msra.mxu0 1.0
        %990 = vmatprep.subr.mxu0 0.0
        %991 = vmatpush2.msra.mxu0 1.0
        %992 = vmatprep.subr.mxu0 0.0
        %993 = vmatpush2.msra.mxu0 1.0
        %994 = vmatprep.subr.mxu0 0.0
        %995 = vmatpush2.msra.mxu0 1.0
        %996 = vmatprep.subr.mxu0 0.0
        %997 = vmatpush2.msra.mxu0 1.0
        %998 = vmatprep.subr.mxu0 0.0
        %999 = vmatpush2.msra.mxu0 1.0
        %1000 = vmatprep.subr.mxu0 0.0
        %1001 = vmatpush2.msra.mxu0 1.0
        %1002 = vmatprep.subr.mxu0 0.0
        %1003 = vmatpush2.msra.mxu0 1.0
        %1004 = vmatprep.subr.mxu0 0.0
        %1005 = vmatpush2.msra.mxu0 1.0
        %1006 = vmatprep.subr.mxu0 0.0
        %1007 = vmatpush2.msra.mxu0 1.0
        %1008 = vmatprep.mubr.f32.mxu0 %v881
        %1009 = vmatmul.mubr.f32.gmra.mxu0 %v880
        %v1010 = vpop.f32.mrf.mxu0
        %v1011 = vadd.f32 0.0, %v1010
        %v1012 = vpop.f32.mrf.mxu0
        %1013 = vmatprep.mubr.f32.mxu0 %v885
        %1014 = vmatmul.mubr.f32.gmra.mxu0 %v884
        %v1015 = vpop.f32.mrf.mxu0
        %v1016 = vadd.f32 0.0, %v1015
        %v1017 = vpop.f32.mrf.mxu0
        %1018 = vmatprep.mubr.f32.mxu0 %v889
        %1019 = vmatmul.mubr.f32.gmra.mxu0 %v888
        %v1020 = vpop.f32.mrf.mxu0
        %v1021 = vadd.f32 0.0, %v1020
        %v1022 = vpop.f32.mrf.mxu0
        %1023 = vmatprep.mubr.f32.mxu0 %v893
        %1024 = vmatmul.mubr.f32.gmra.mxu0 %v892
        %v1025 = vpop.f32.mrf.mxu0
        %v1026 = vadd.f32 0.0, %v1025
        %v1027 = vpop.f32.mrf.mxu0
        %1028 = vmatprep.mubr.f32.mxu0 %v897
        %1029 = vmatmul.mubr.f32.gmra.mxu0 %v896
        %v1030 = vpop.f32.mrf.mxu0
        %v1031 = vadd.f32 0.0, %v1030
        %v1032 = vpop.f32.mrf.mxu0
        %1033 = vmatprep.mubr.f32.mxu0 %v901
        %1034 = vmatmul.mubr.f32.gmra.mxu0 %v900
        %v1035 = vpop.f32.mrf.mxu0
        %v1036 = vadd.f32 0.0, %v1035
        %v1037 = vpop.f32.mrf.mxu0
        %1038 = vmatprep.mubr.f32.mxu0 %v905
        %1039 = vmatmul.mubr.f32.gmra.mxu0 %v904
        %v1040 = vpop.f32.mrf.mxu0
        %v1041 = vadd.f32 0.0, %v1040
        %v1042 = vpop.f32.mrf.mxu0
        %1043 = vmatprep.mubr.f32.mxu0 %v909
        %1044 = vmatmul.mubr.f32.gmra.mxu0 %v908
        %v1045 = vpop.f32.mrf.mxu0
        %v1046 = vadd.f32 0.0, %v1045
        %v1047 = vpop.f32.mrf.mxu0
        %1048 = vmatprep.mubr.f32.mxu0 %v913
        %1049 = vmatmul.mubr.f32.gmra.mxu0 %v912
        %v1050 = vpop.f32.mrf.mxu0
        %v1051 = vadd.f32 0.0, %v1050
        %v1052 = vpop.f32.mrf.mxu0
        %1053 = vmatprep.mubr.f32.mxu0 %v917
        %1054 = vmatmul.mubr.f32.gmra.mxu0 %v916
        %v1055 = vpop.f32.mrf.mxu0
        %v1056 = vadd.f32 0.0, %v1055
        %v1057 = vpop.f32.mrf.mxu0
        %1058 = vmatprep.mubr.f32.mxu0 %v921
        %1059 = vmatmul.mubr.f32.gmra.mxu0 %v920
        %v1060 = vpop.f32.mrf.mxu0
        %v1061 = vadd.f32 0.0, %v1060
        %v1062 = vpop.f32.mrf.mxu0
        %1063 = vmatprep.mubr.f32.mxu0 %v925
        %1064 = vmatmul.mubr.f32.gmra.mxu0 %v924
        %v1065 = vpop.f32.mrf.mxu0
        %v1066 = vadd.f32 0.0, %v1065
        %v1067 = vpop.f32.mrf.mxu0
        %1068 = vmatprep.mubr.f32.mxu0 %v929
        %1069 = vmatmul.mubr.f32.gmra.mxu0 %v928
        %v1070 = vpop.f32.mrf.mxu0
        %v1071 = vadd.f32 0.0, %v1070
        %v1072 = vpop.f32.mrf.mxu0
        %1073 = vmatprep.mubr.f32.mxu0 %v933
        %1074 = vmatmul.mubr.f32.gmra.mxu0 %v932
        %v1075 = vpop.f32.mrf.mxu0
        %v1076 = vadd.f32 0.0, %v1075
        %v1077 = vpop.f32.mrf.mxu0
        %1078 = vmatprep.mubr.f32.mxu0 %v937
        %1079 = vmatmul.mubr.f32.gmra.mxu0 %v936
        %v1080 = vpop.f32.mrf.mxu0
        %v1081 = vadd.f32 0.0, %v1080
        %v1082 = vpop.f32.mrf.mxu0
        %1083 = vmatprep.mubr.f32.mxu0 %v941
        %1084 = vmatmul.mubr.f32.gmra.mxu0 %v940
        %v1085 = vpop.f32.mrf.mxu0
        %v1086 = vadd.f32 0.0, %v1085
        %v1087 = vpop.f32.mrf.mxu0
        %1088 = vdwg.mxu0
        %1089 = vmatprep.subr.mxu0 0.0
        %1090 = vmatpush1.msra.mxu0 1.0
        %1091 = vmatprep.subr.mxu0 0.0
        %1092 = vmatpush1.msra.mxu0 1.0
        %1093 = vmatprep.subr.mxu0 0.0
        %1094 = vmatpush1.msra.mxu0 1.0
        %1095 = vmatprep.subr.mxu0 0.0
        %1096 = vmatpush1.msra.mxu0 1.0
        %1097 = vmatprep.subr.mxu0 0.0
        %1098 = vmatpush1.msra.mxu0 1.0
        %1099 = vmatprep.subr.mxu0 0.0
        %1100 = vmatpush1.msra.mxu0 1.0
        %1101 = vmatprep.subr.mxu0 0.0
        %1102 = vmatpush1.msra.mxu0 1.0
        %1103 = vmatprep.subr.mxu0 0.0
        %1104 = vmatpush1.msra.mxu0 1.0
        %1105 = vmatprep.subr.mxu0 0.0
        %1106 = vmatpush1.msra.mxu0 1.0
        %1107 = vmatprep.subr.mxu0 0.0
        %1108 = vmatpush1.msra.mxu0 1.0
        %1109 = vmatprep.subr.mxu0 0.0
        %1110 = vmatpush1.msra.mxu0 1.0
        %1111 = vmatprep.subr.mxu0 0.0
        %1112 = vmatpush1.msra.mxu0 1.0
        %1113 = vmatprep.subr.mxu0 0.0
        %1114 = vmatpush1.msra.mxu0 1.0
        %1115 = vmatprep.subr.mxu0 0.0
        %1116 = vmatpush1.msra.mxu0 1.0
        %1117 = vmatprep.subr.mxu0 0.0
        %1118 = vmatpush1.msra.mxu0 1.0
        %1119 = vmatprep.subr.mxu0 0.0
        %1120 = vmatpush1.msra.mxu0 1.0
        %1121 = vmatprep.subr.mxu0 0.0
        %1122 = vmatpush2.msra.mxu0 1.0
        %1123 = vmatprep.subr.mxu0 0.0
        %1124 = vmatpush2.msra.mxu0 1.0
        %1125 = vmatprep.subr.mxu0 0.0
        %1126 = vmatpush2.msra.mxu0 1.0
        %1127 = vmatprep.subr.mxu0 0.0
        %1128 = vmatpush2.msra.mxu0 1.0
        %1129 = vmatprep.subr.mxu0 0.0
        %1130 = vmatpush2.msra.mxu0 1.0
        %1131 = vmatprep.subr.mxu0 0.0
        %1132 = vmatpush2.msra.mxu0 1.0
        %1133 = vmatprep.subr.mxu0 0.0
        %1134 = vmatpush2.msra.mxu0 1.0
        %1135 = vmatprep.subr.mxu0 0.0
        %1136 = vmatpush2.msra.mxu0 1.0
        %1137 = vmatprep.subr.mxu0 0.0
        %1138 = vmatpush2.msra.mxu0 1.0
        %1139 = vmatprep.subr.mxu0 0.0
        %1140 = vmatpush2.msra.mxu0 1.0
        %1141 = vmatprep.subr.mxu0 0.0
        %1142 = vmatpush2.msra.mxu0 1.0
        %1143 = vmatprep.subr.mxu0 0.0
        %1144 = vmatpush2.msra.mxu0 1.0
        %1145 = vmatprep.subr.mxu0 0.0
        %1146 = vmatpush2.msra.mxu0 1.0
        %1147 = vmatprep.subr.mxu0 0.0
        %1148 = vmatpush2.msra.mxu0 1.0
        %1149 = vmatprep.subr.mxu0 0.0
        %1150 = vmatpush2.msra.mxu0 1.0
        %1151 = vmatprep.subr.mxu0 0.0
        %1152 = vmatpush2.msra.mxu0 1.0
        %1153 = vmatprep.mubr.f32.mxu0 %v883
        %1154 = vmatmul.mubr.f32.gmra.mxu0 %v882
        %v1155 = vpop.f32.mrf.mxu0
        %v1156 = vadd.f32 %v1011, %v1155
        %v1157 = vpop.f32.mrf.mxu0
        %1158 = vmatprep.mubr.f32.mxu0 %v887
        %1159 = vmatmul.mubr.f32.gmra.mxu0 %v886
        %v1160 = vpop.f32.mrf.mxu0
        %v1161 = vadd.f32 %v1016, %v1160
        %v1162 = vpop.f32.mrf.mxu0
        %1163 = vmatprep.mubr.f32.mxu0 %v891
        %1164 = vmatmul.mubr.f32.gmra.mxu0 %v890
        %v1165 = vpop.f32.mrf.mxu0
        %v1166 = vadd.f32 %v1021, %v1165
        %v1167 = vpop.f32.mrf.mxu0
        %1168 = vmatprep.mubr.f32.mxu0 %v895
        %1169 = vmatmul.mubr.f32.gmra.mxu0 %v894
        %v1170 = vpop.f32.mrf.mxu0
        %v1171 = vadd.f32 %v1026, %v1170
        %v1172 = vpop.f32.mrf.mxu0
        %1173 = vmatprep.mubr.f32.mxu0 %v899
        %1174 = vmatmul.mubr.f32.gmra.mxu0 %v898
        %v1175 = vpop.f32.mrf.mxu0
        %v1176 = vadd.f32 %v1031, %v1175
        %v1177 = vpop.f32.mrf.mxu0
        %1178 = vmatprep.mubr.f32.mxu0 %v903
        %1179 = vmatmul.mubr.f32.gmra.mxu0 %v902
        %v1180 = vpop.f32.mrf.mxu0
        %v1181 = vadd.f32 %v1036, %v1180
        %v1182 = vpop.f32.mrf.mxu0
        %1183 = vmatprep.mubr.f32.mxu0 %v907
        %1184 = vmatmul.mubr.f32.gmra.mxu0 %v906
        %v1185 = vpop.f32.mrf.mxu0
        %v1186 = vadd.f32 %v1041, %v1185
        %v1187 = vpop.f32.mrf.mxu0
        %1188 = vmatprep.mubr.f32.mxu0 %v911
        %1189 = vmatmul.mubr.f32.gmra.mxu0 %v910
        %v1190 = vpop.f32.mrf.mxu0
        %v1191 = vadd.f32 %v1046, %v1190
        %v1192 = vpop.f32.mrf.mxu0
        %1193 = vmatprep.mubr.f32.mxu0 %v915
        %1194 = vmatmul.mubr.f32.gmra.mxu0 %v914
        %v1195 = vpop.f32.mrf.mxu0
        %v1196 = vadd.f32 %v1051, %v1195
        %v1197 = vpop.f32.mrf.mxu0
        %1198 = vmatprep.mubr.f32.mxu0 %v919
        %1199 = vmatmul.mubr.f32.gmra.mxu0 %v918
        %v1200 = vpop.f32.mrf.mxu0
        %v1201 = vadd.f32 %v1056, %v1200
        %v1202 = vpop.f32.mrf.mxu0
        %1203 = vmatprep.mubr.f32.mxu0 %v923
        %1204 = vmatmul.mubr.f32.gmra.mxu0 %v922
        %v1205 = vpop.f32.mrf.mxu0
        %v1206 = vadd.f32 %v1061, %v1205
        %v1207 = vpop.f32.mrf.mxu0
        %1208 = vmatprep.mubr.f32.mxu0 %v927
        %1209 = vmatmul.mubr.f32.gmra.mxu0 %v926
        %v1210 = vpop.f32.mrf.mxu0
        %v1211 = vadd.f32 %v1066, %v1210
        %v1212 = vpop.f32.mrf.mxu0
        %1213 = vmatprep.mubr.f32.mxu0 %v931
        %1214 = vmatmul.mubr.f32.gmra.mxu0 %v930
        %v1215 = vpop.f32.mrf.mxu0
        %v1216 = vadd.f32 %v1071, %v1215
        %v1217 = vpop.f32.mrf.mxu0
        %1218 = vmatprep.mubr.f32.mxu0 %v935
        %1219 = vmatmul.mubr.f32.gmra.mxu0 %v934
        %v1220 = vpop.f32.mrf.mxu0
        %v1221 = vadd.f32 %v1076, %v1220
        %v1222 = vpop.f32.mrf.mxu0
        %1223 = vmatprep.mubr.f32.mxu0 %v939
        %1224 = vmatmul.mubr.f32.gmra.mxu0 %v938
        %v1225 = vpop.f32.mrf.mxu0
        %v1226 = vadd.f32 %v1081, %v1225
        %v1227 = vpop.f32.mrf.mxu0
        %1228 = vmatprep.mubr.f32.mxu0 %v943
        %1229 = vmatmul.mubr.f32.gmra.mxu0 %v942
        %v1230 = vpop.f32.mrf.mxu0
        %v1231 = vadd.f32 %v1086, %v1230
        %v1232 = vpop.f32.mrf.mxu0
        %1233 = vdwg.mxu0
        %v1234 = vmul.f32 %v802, 0.001953125
        %v1235 = vmul.f32 %v807, 0.001953125
        %v1236 = vmul.f32 %v812, 0.001953125
        %v1237 = vmul.f32 %v817, 0.001953125
        %v1238 = vmul.f32 %v822, 0.001953125
        %v1239 = vmul.f32 %v827, 0.001953125
        %v1240 = vmul.f32 %v832, 0.001953125
        %v1241 = vmul.f32 %v837, 0.001953125
        %v1242 = vmul.f32 %v842, 0.001953125
        %v1243 = vmul.f32 %v847, 0.001953125
        %v1244 = vmul.f32 %v852, 0.001953125
        %v1245 = vmul.f32 %v857, 0.001953125
        %v1246 = vmul.f32 %v862, 0.001953125
        %v1247 = vmul.f32 %v867, 0.001953125
        %v1248 = vmul.f32 %v872, 0.001953125
        %v1249 = vmul.f32 %v877, 0.001953125
        %v1250 = vmul.f32 %v1156, 0.001953125
        %v1251 = vmul.f32 %v1161, 0.001953125
        %v1252 = vmul.f32 %v1166, 0.001953125
        %v1253 = vmul.f32 %v1171, 0.001953125
        %v1254 = vmul.f32 %v1176, 0.001953125
        %v1255 = vmul.f32 %v1181, 0.001953125
        %v1256 = vmul.f32 %v1186, 0.001953125
        %v1257 = vmul.f32 %v1191, 0.001953125
        %v1258 = vmul.f32 %v1196, 0.001953125
        %v1259 = vmul.f32 %v1201, 0.001953125
        %v1260 = vmul.f32 %v1206, 0.001953125
        %v1261 = vmul.f32 %v1211, 0.001953125
        %v1262 = vmul.f32 %v1216, 0.001953125
        %v1263 = vmul.f32 %v1221, 0.001953125
        %v1264 = vmul.f32 %v1226, 0.001953125
        %v1265 = vmul.f32 %v1231, 0.001953125
        %v1266 = vmul.f32 %v1234, %v1234
        %v1267 = vmul.f32 %v1235, %v1235
        %v1268 = vmul.f32 %v1236, %v1236
        %v1269 = vmul.f32 %v1237, %v1237
        %v1270 = vmul.f32 %v1238, %v1238
        %v1271 = vmul.f32 %v1239, %v1239
        %v1272 = vmul.f32 %v1240, %v1240
        %v1273 = vmul.f32 %v1241, %v1241
        %v1274 = vmul.f32 %v1242, %v1242
        %v1275 = vmul.f32 %v1243, %v1243
        %v1276 = vmul.f32 %v1244, %v1244
        %v1277 = vmul.f32 %v1245, %v1245
        %v1278 = vmul.f32 %v1246, %v1246
        %v1279 = vmul.f32 %v1247, %v1247
        %v1280 = vmul.f32 %v1248, %v1248
        %v1281 = vmul.f32 %v1249, %v1249
        %v1282 = vsub.f32 %v1250, %v1266
        %v1283 = vsub.f32 %v1251, %v1267
        %v1284 = vsub.f32 %v1252, %v1268
        %v1285 = vsub.f32 %v1253, %v1269
        %v1286 = vsub.f32 %v1254, %v1270
        %v1287 = vsub.f32 %v1255, %v1271
        %v1288 = vsub.f32 %v1256, %v1272
        %v1289 = vsub.f32 %v1257, %v1273
        %v1290 = vsub.f32 %v1258, %v1274
        %v1291 = vsub.f32 %v1259, %v1275
        %v1292 = vsub.f32 %v1260, %v1276
        %v1293 = vsub.f32 %v1261, %v1277
        %v1294 = vsub.f32 %v1262, %v1278
        %v1295 = vsub.f32 %v1263, %v1279
        %v1296 = vsub.f32 %v1264, %v1280
        %v1297 = vsub.f32 %v1265, %v1281
        %v1298 = vadd.f32 %v1282, 1e-05
        %v1299 = vadd.f32 %v1283, 1e-05
        %v1300 = vadd.f32 %v1284, 1e-05
        %v1301 = vadd.f32 %v1285, 1e-05
        %v1302 = vadd.f32 %v1286, 1e-05
        %v1303 = vadd.f32 %v1287, 1e-05
        %v1304 = vadd.f32 %v1288, 1e-05
        %v1305 = vadd.f32 %v1289, 1e-05
        %v1306 = vadd.f32 %v1290, 1e-05
        %v1307 = vadd.f32 %v1291, 1e-05
        %v1308 = vadd.f32 %v1292, 1e-05
        %v1309 = vadd.f32 %v1293, 1e-05
        %v1310 = vadd.f32 %v1294, 1e-05
        %v1311 = vadd.f32 %v1295, 1e-05
        %v1312 = vadd.f32 %v1296, 1e-05
        %v1313 = vadd.f32 %v1297, 1e-05
        %v1314 = vrsqrt.pop %v1298
        %v1315 = vrsqrt.pop %v1299
        %v1316 = vrsqrt.pop %v1300
        %v1317 = vrsqrt.pop %v1301
        %v1318 = vrsqrt.pop %v1302
        %v1319 = vrsqrt.pop %v1303
        %v1320 = vrsqrt.pop %v1304
        %v1321 = vrsqrt.pop %v1305
        %v1322 = vrsqrt.pop %v1306
        %v1323 = vrsqrt.pop %v1307
        %v1324 = vrsqrt.pop %v1308
        %v1325 = vrsqrt.pop %v1309
        %v1326 = vrsqrt.pop %v1310
        %v1327 = vrsqrt.pop %v1311
        %v1328 = vrsqrt.pop %v1312
        %v1329 = vrsqrt.pop %v1313
        %1331 = vset.pattern.permute.xlu0 0
        %1332 = vperm.xlu0 %1331, %v1234
        %v1333 = vpop.permute.xlu0 %1332
        %1336 = vset.pattern.permute.xlu0 0
        %1337 = vperm.xlu0 %1336, %v1235
        %v1338 = vpop.permute.xlu0 %1337
        %1341 = vset.pattern.permute.xlu0 0
        %1342 = vperm.xlu0 %1341, %v1236
        %v1343 = vpop.permute.xlu0 %1342
        %1346 = vset.pattern.permute.xlu0 0
        %1347 = vperm.xlu0 %1346, %v1237
        %v1348 = vpop.permute.xlu0 %1347
        %1351 = vset.pattern.permute.xlu0 0
        %1352 = vperm.xlu0 %1351, %v1238
        %v1353 = vpop.permute.xlu0 %1352
        %1356 = vset.pattern.permute.xlu0 0
        %1357 = vperm.xlu0 %1356, %v1239
        %v1358 = vpop.permute.xlu0 %1357
        %1361 = vset.pattern.permute.xlu0 0
        %1362 = vperm.xlu0 %1361, %v1240
        %v1363 = vpop.permute.xlu0 %1362
        %1366 = vset.pattern.permute.xlu0 0
        %1367 = vperm.xlu0 %1366, %v1241
        %v1368 = vpop.permute.xlu0 %1367
        %1371 = vset.pattern.permute.xlu0 0
        %1372 = vperm.xlu0 %1371, %v1242
        %v1373 = vpop.permute.xlu0 %1372
        %1376 = vset.pattern.permute.xlu0 0
        %1377 = vperm.xlu0 %1376, %v1243
        %v1378 = vpop.permute.xlu0 %1377
        %1381 = vset.pattern.permute.xlu0 0
        %1382 = vperm.xlu0 %1381, %v1244
        %v1383 = vpop.permute.xlu0 %1382
        %1386 = vset.pattern.permute.xlu0 0
        %1387 = vperm.xlu0 %1386, %v1245
        %v1388 = vpop.permute.xlu0 %1387
        %1391 = vset.pattern.permute.xlu0 0
        %1392 = vperm.xlu0 %1391, %v1246
        %v1393 = vpop.permute.xlu0 %1392
        %1396 = vset.pattern.permute.xlu0 0
        %1397 = vperm.xlu0 %1396, %v1247
        %v1398 = vpop.permute.xlu0 %1397
        %1401 = vset.pattern.permute.xlu0 0
        %1402 = vperm.xlu0 %1401, %v1248
        %v1403 = vpop.permute.xlu0 %1402
        %1406 = vset.pattern.permute.xlu0 0
        %1407 = vperm.xlu0 %1406, %v1249
        %v1408 = vpop.permute.xlu0 %1407
        %v1410 = vsub.f32 %v335, %v1333
        %v1411 = vsub.f32 %v337, %v1333
        %v1412 = vsub.f32 %v496, %v1333
        %v1413 = vsub.f32 %v498, %v1333
        %v1414 = vsub.f32 %v341, %v1338
        %v1415 = vsub.f32 %v343, %v1338
        %v1416 = vsub.f32 %v502, %v1338
        %v1417 = vsub.f32 %v504, %v1338
        %v1418 = vsub.f32 %v347, %v1343
        %v1419 = vsub.f32 %v349, %v1343
        %v1420 = vsub.f32 %v508, %v1343
        %v1421 = vsub.f32 %v510, %v1343
        %v1422 = vsub.f32 %v353, %v1348
        %v1423 = vsub.f32 %v355, %v1348
        %v1424 = vsub.f32 %v514, %v1348
        %v1425 = vsub.f32 %v516, %v1348
        %v1426 = vsub.f32 %v359, %v1353
        %v1427 = vsub.f32 %v361, %v1353
        %v1428 = vsub.f32 %v520, %v1353
        %v1429 = vsub.f32 %v522, %v1353
        %v1430 = vsub.f32 %v365, %v1358
        %v1431 = vsub.f32 %v367, %v1358
        %v1432 = vsub.f32 %v526, %v1358
        %v1433 = vsub.f32 %v528, %v1358
        %v1434 = vsub.f32 %v371, %v1363
        %v1435 = vsub.f32 %v373, %v1363
        %v1436 = vsub.f32 %v532, %v1363
        %v1437 = vsub.f32 %v534, %v1363
        %v1438 = vsub.f32 %v377, %v1368
        %v1439 = vsub.f32 %v379, %v1368
        %v1440 = vsub.f32 %v538, %v1368
        %v1441 = vsub.f32 %v540, %v1368
        %v1442 = vsub.f32 %v383, %v1373
        %v1443 = vsub.f32 %v385, %v1373
        %v1444 = vsub.f32 %v544, %v1373
        %v1445 = vsub.f32 %v546, %v1373
        %v1446 = vsub.f32 %v389, %v1378
        %v1447 = vsub.f32 %v391, %v1378
        %v1448 = vsub.f32 %v550, %v1378
        %v1449 = vsub.f32 %v552, %v1378
        %v1450 = vsub.f32 %v395, %v1383
        %v1451 = vsub.f32 %v397, %v1383
        %v1452 = vsub.f32 %v556, %v1383
        %v1453 = vsub.f32 %v558, %v1383
        %v1454 = vsub.f32 %v401, %v1388
        %v1455 = vsub.f32 %v403, %v1388
        %v1456 = vsub.f32 %v562, %v1388
        %v1457 = vsub.f32 %v564, %v1388
        %v1458 = vsub.f32 %v407, %v1393
        %v1459 = vsub.f32 %v409, %v1393
        %v1460 = vsub.f32 %v568, %v1393
        %v1461 = vsub.f32 %v570, %v1393
        %v1462 = vsub.f32 %v413, %v1398
        %v1463 = vsub.f32 %v415, %v1398
        %v1464 = vsub.f32 %v574, %v1398
        %v1465 = vsub.f32 %v576, %v1398
        %v1466 = vsub.f32 %v419, %v1403
        %v1467 = vsub.f32 %v421, %v1403
        %v1468 = vsub.f32 %v580, %v1403
        %v1469 = vsub.f32 %v582, %v1403
        %v1470 = vsub.f32 %v425, %v1408
        %v1471 = vsub.f32 %v427, %v1408
        %v1472 = vsub.f32 %v586, %v1408
        %v1473 = vsub.f32 %v588, %v1408
        %1475 = vset.pattern.permute.xlu0 0
        %1476 = vperm.xlu0 %1475, %v1314
        %v1477 = vpop.permute.xlu0 %1476
        %1480 = vset.pattern.permute.xlu0 0
        %1481 = vperm.xlu0 %1480, %v1315
        %v1482 = vpop.permute.xlu0 %1481
        %1485 = vset.pattern.permute.xlu0 0
        %1486 = vperm.xlu0 %1485, %v1316
        %v1487 = vpop.permute.xlu0 %1486
        %1490 = vset.pattern.permute.xlu0 0
        %1491 = vperm.xlu0 %1490, %v1317
        %v1492 = vpop.permute.xlu0 %1491
        %1495 = vset.pattern.permute.xlu0 0
        %1496 = vperm.xlu0 %1495, %v1318
        %v1497 = vpop.permute.xlu0 %1496
        %1500 = vset.pattern.permute.xlu0 0
        %1501 = vperm.xlu0 %1500, %v1319
        %v1502 = vpop.permute.xlu0 %1501
        %1505 = vset.pattern.permute.xlu0 0
        %1506 = vperm.xlu0 %1505, %v1320
        %v1507 = vpop.permute.xlu0 %1506
        %1510 = vset.pattern.permute.xlu0 0
        %1511 = vperm.xlu0 %1510, %v1321
        %v1512 = vpop.permute.xlu0 %1511
        %1515 = vset.pattern.permute.xlu0 0
        %1516 = vperm.xlu0 %1515, %v1322
        %v1517 = vpop.permute.xlu0 %1516
        %1520 = vset.pattern.permute.xlu0 0
        %1521 = vperm.xlu0 %1520, %v1323
        %v1522 = vpop.permute.xlu0 %1521
        %1525 = vset.pattern.permute.xlu0 0
        %1526 = vperm.xlu0 %1525, %v1324
        %v1527 = vpop.permute.xlu0 %1526
        %1530 = vset.pattern.permute.xlu0 0
        %1531 = vperm.xlu0 %1530, %v1325
        %v1532 = vpop.permute.xlu0 %1531
        %1535 = vset.pattern.permute.xlu0 0
        %1536 = vperm.xlu0 %1535, %v1326
        %v1537 = vpop.permute.xlu0 %1536
        %1540 = vset.pattern.permute.xlu0 0
        %1541 = vperm.xlu0 %1540, %v1327
        %v1542 = vpop.permute.xlu0 %1541
        %1545 = vset.pattern.permute.xlu0 0
        %1546 = vperm.xlu0 %1545, %v1328
        %v1547 = vpop.permute.xlu0 %1546
        %1550 = vset.pattern.permute.xlu0 0
        %1551 = vperm.xlu0 %1550, %v1329
        %v1552 = vpop.permute.xlu0 %1551
        %v1554 = vmul.f32 %v1410, %v1477
        %v1555 = vmul.f32 %v1411, %v1477
        %v1556 = vmul.f32 %v1412, %v1477
        %v1557 = vmul.f32 %v1413, %v1477
        %v1558 = vmul.f32 %v1414, %v1482
        %v1559 = vmul.f32 %v1415, %v1482
        %v1560 = vmul.f32 %v1416, %v1482
        %v1561 = vmul.f32 %v1417, %v1482
        %v1562 = vmul.f32 %v1418, %v1487
        %v1563 = vmul.f32 %v1419, %v1487
        %v1564 = vmul.f32 %v1420, %v1487
        %v1565 = vmul.f32 %v1421, %v1487
        %v1566 = vmul.f32 %v1422, %v1492
        %v1567 = vmul.f32 %v1423, %v1492
        %v1568 = vmul.f32 %v1424, %v1492
        %v1569 = vmul.f32 %v1425, %v1492
        %v1570 = vmul.f32 %v1426, %v1497
        %v1571 = vmul.f32 %v1427, %v1497
        %v1572 = vmul.f32 %v1428, %v1497
        %v1573 = vmul.f32 %v1429, %v1497
        %v1574 = vmul.f32 %v1430, %v1502
        %v1575 = vmul.f32 %v1431, %v1502
        %v1576 = vmul.f32 %v1432, %v1502
        %v1577 = vmul.f32 %v1433, %v1502
        %v1578 = vmul.f32 %v1434, %v1507
        %v1579 = vmul.f32 %v1435, %v1507
        %v1580 = vmul.f32 %v1436, %v1507
        %v1581 = vmul.f32 %v1437, %v1507
        %v1582 = vmul.f32 %v1438, %v1512
        %v1583 = vmul.f32 %v1439, %v1512
        %v1584 = vmul.f32 %v1440, %v1512
        %v1585 = vmul.f32 %v1441, %v1512
        %v1586 = vmul.f32 %v1442, %v1517
        %v1587 = vmul.f32 %v1443, %v1517
        %v1588 = vmul.f32 %v1444, %v1517
        %v1589 = vmul.f32 %v1445, %v1517
        %v1590 = vmul.f32 %v1446, %v1522
        %v1591 = vmul.f32 %v1447, %v1522
        %v1592 = vmul.f32 %v1448, %v1522
        %v1593 = vmul.f32 %v1449, %v1522
        %v1594 = vmul.f32 %v1450, %v1527
        %v1595 = vmul.f32 %v1451, %v1527
        %v1596 = vmul.f32 %v1452, %v1527
        %v1597 = vmul.f32 %v1453, %v1527
        %v1598 = vmul.f32 %v1454, %v1532
        %v1599 = vmul.f32 %v1455, %v1532
        %v1600 = vmul.f32 %v1456, %v1532
        %v1601 = vmul.f32 %v1457, %v1532
        %v1602 = vmul.f32 %v1458, %v1537
        %v1603 = vmul.f32 %v1459, %v1537
        %v1604 = vmul.f32 %v1460, %v1537
        %v1605 = vmul.f32 %v1461, %v1537
        %v1606 = vmul.f32 %v1462, %v1542
        %v1607 = vmul.f32 %v1463, %v1542
        %v1608 = vmul.f32 %v1464, %v1542
        %v1609 = vmul.f32 %v1465, %v1542
        %v1610 = vmul.f32 %v1466, %v1547
        %v1611 = vmul.f32 %v1467, %v1547
        %v1612 = vmul.f32 %v1468, %v1547
        %v1613 = vmul.f32 %v1469, %v1547
        %v1614 = vmul.f32 %v1470, %v1552
        %v1615 = vmul.f32 %v1471, %v1552
        %v1616 = vmul.f32 %v1472, %v1552
        %v1617 = vmul.f32 %v1473, %v1552
        %v1618 = vld [vmem:[%s2] sm:$0xf]
        %v1620 = vlaneseq
        %v1621 = vshrl.u32 %v1620, 7
        %v1622 = vsub.s32 0, %v1621
        %v1623 = vrot.slane %v1618, %v1622
        %v1624 = vlaneseq
        %v1625 = vshrl.u32 %v1624, 7
        %v1626 = vsub.s32 1, %v1625
        %v1627 = vrot.slane %v1618, %v1626
        %v1628 = vlaneseq
        %v1629 = vshrl.u32 %v1628, 7
        %v1630 = vsub.s32 2, %v1629
        %v1631 = vrot.slane %v1618, %v1630
        %v1632 = vlaneseq
        %v1633 = vshrl.u32 %v1632, 7
        %v1634 = vsub.s32 3, %v1633
        %v1635 = vrot.slane %v1618, %v1634
        %v1640 = vmul.f32 %v1554, %v1623
        %v1641 = vmul.f32 %v1555, %v1627
        %v1642 = vmul.f32 %v1556, %v1631
        %v1643 = vmul.f32 %v1557, %v1635
        %v1644 = vmul.f32 %v1558, %v1623
        %v1645 = vmul.f32 %v1559, %v1627
        %v1646 = vmul.f32 %v1560, %v1631
        %v1647 = vmul.f32 %v1561, %v1635
        %v1648 = vmul.f32 %v1562, %v1623
        %v1649 = vmul.f32 %v1563, %v1627
        %v1650 = vmul.f32 %v1564, %v1631
        %v1651 = vmul.f32 %v1565, %v1635
        %v1652 = vmul.f32 %v1566, %v1623
        %v1653 = vmul.f32 %v1567, %v1627
        %v1654 = vmul.f32 %v1568, %v1631
        %v1655 = vmul.f32 %v1569, %v1635
        %v1656 = vmul.f32 %v1570, %v1623
        %v1657 = vmul.f32 %v1571, %v1627
        %v1658 = vmul.f32 %v1572, %v1631
        %v1659 = vmul.f32 %v1573, %v1635
        %v1660 = vmul.f32 %v1574, %v1623
        %v1661 = vmul.f32 %v1575, %v1627
        %v1662 = vmul.f32 %v1576, %v1631
        %v1663 = vmul.f32 %v1577, %v1635
        %v1664 = vmul.f32 %v1578, %v1623
        %v1665 = vmul.f32 %v1579, %v1627
        %v1666 = vmul.f32 %v1580, %v1631
        %v1667 = vmul.f32 %v1581, %v1635
        %v1668 = vmul.f32 %v1582, %v1623
        %v1669 = vmul.f32 %v1583, %v1627
        %v1670 = vmul.f32 %v1584, %v1631
        %v1671 = vmul.f32 %v1585, %v1635
        %v1672 = vmul.f32 %v1586, %v1623
        %v1673 = vmul.f32 %v1587, %v1627
        %v1674 = vmul.f32 %v1588, %v1631
        %v1675 = vmul.f32 %v1589, %v1635
        %v1676 = vmul.f32 %v1590, %v1623
        %v1677 = vmul.f32 %v1591, %v1627
        %v1678 = vmul.f32 %v1592, %v1631
        %v1679 = vmul.f32 %v1593, %v1635
        %v1680 = vmul.f32 %v1594, %v1623
        %v1681 = vmul.f32 %v1595, %v1627
        %v1682 = vmul.f32 %v1596, %v1631
        %v1683 = vmul.f32 %v1597, %v1635
        %v1684 = vmul.f32 %v1598, %v1623
        %v1685 = vmul.f32 %v1599, %v1627
        %v1686 = vmul.f32 %v1600, %v1631
        %v1687 = vmul.f32 %v1601, %v1635
        %v1688 = vmul.f32 %v1602, %v1623
        %v1689 = vmul.f32 %v1603, %v1627
        %v1690 = vmul.f32 %v1604, %v1631
        %v1691 = vmul.f32 %v1605, %v1635
        %v1692 = vmul.f32 %v1606, %v1623
        %v1693 = vmul.f32 %v1607, %v1627
        %v1694 = vmul.f32 %v1608, %v1631
        %v1695 = vmul.f32 %v1609, %v1635
        %v1696 = vmul.f32 %v1610, %v1623
        %v1697 = vmul.f32 %v1611, %v1627
        %v1698 = vmul.f32 %v1612, %v1631
        %v1699 = vmul.f32 %v1613, %v1635
        %v1700 = vmul.f32 %v1614, %v1623
        %v1701 = vmul.f32 %v1615, %v1627
        %v1702 = vmul.f32 %v1616, %v1631
        %v1703 = vmul.f32 %v1617, %v1635
        %v1704 = vld [vmem:[%s3] sm:$0xf]
        %v1706 = vlaneseq
        %v1707 = vshrl.u32 %v1706, 7
        %v1708 = vsub.s32 0, %v1707
        %v1709 = vrot.slane %v1704, %v1708
        %v1710 = vlaneseq
        %v1711 = vshrl.u32 %v1710, 7
        %v1712 = vsub.s32 1, %v1711
        %v1713 = vrot.slane %v1704, %v1712
        %v1714 = vlaneseq
        %v1715 = vshrl.u32 %v1714, 7
        %v1716 = vsub.s32 2, %v1715
        %v1717 = vrot.slane %v1704, %v1716
        %v1718 = vlaneseq
        %v1719 = vshrl.u32 %v1718, 7
        %v1720 = vsub.s32 3, %v1719
        %v1721 = vrot.slane %v1704, %v1720
        %v1726 = vadd.f32 %v1640, %v1709
        %v1727 = vadd.f32 %v1641, %v1713
        %v1728 = vadd.f32 %v1642, %v1717
        %v1729 = vadd.f32 %v1643, %v1721
        %v1730 = vadd.f32 %v1644, %v1709
        %v1731 = vadd.f32 %v1645, %v1713
        %v1732 = vadd.f32 %v1646, %v1717
        %v1733 = vadd.f32 %v1647, %v1721
        %v1734 = vadd.f32 %v1648, %v1709
        %v1735 = vadd.f32 %v1649, %v1713
        %v1736 = vadd.f32 %v1650, %v1717
        %v1737 = vadd.f32 %v1651, %v1721
        %v1738 = vadd.f32 %v1652, %v1709
        %v1739 = vadd.f32 %v1653, %v1713
        %v1740 = vadd.f32 %v1654, %v1717
        %v1741 = vadd.f32 %v1655, %v1721
        %v1742 = vadd.f32 %v1656, %v1709
        %v1743 = vadd.f32 %v1657, %v1713
        %v1744 = vadd.f32 %v1658, %v1717
        %v1745 = vadd.f32 %v1659, %v1721
        %v1746 = vadd.f32 %v1660, %v1709
        %v1747 = vadd.f32 %v1661, %v1713
        %v1748 = vadd.f32 %v1662, %v1717
        %v1749 = vadd.f32 %v1663, %v1721
        %v1750 = vadd.f32 %v1664, %v1709
        %v1751 = vadd.f32 %v1665, %v1713
        %v1752 = vadd.f32 %v1666, %v1717
        %v1753 = vadd.f32 %v1667, %v1721
        %v1754 = vadd.f32 %v1668, %v1709
        %v1755 = vadd.f32 %v1669, %v1713
        %v1756 = vadd.f32 %v1670, %v1717
        %v1757 = vadd.f32 %v1671, %v1721
        %v1758 = vadd.f32 %v1672, %v1709
        %v1759 = vadd.f32 %v1673, %v1713
        %v1760 = vadd.f32 %v1674, %v1717
        %v1761 = vadd.f32 %v1675, %v1721
        %v1762 = vadd.f32 %v1676, %v1709
        %v1763 = vadd.f32 %v1677, %v1713
        %v1764 = vadd.f32 %v1678, %v1717
        %v1765 = vadd.f32 %v1679, %v1721
        %v1766 = vadd.f32 %v1680, %v1709
        %v1767 = vadd.f32 %v1681, %v1713
        %v1768 = vadd.f32 %v1682, %v1717
        %v1769 = vadd.f32 %v1683, %v1721
        %v1770 = vadd.f32 %v1684, %v1709
        %v1771 = vadd.f32 %v1685, %v1713
        %v1772 = vadd.f32 %v1686, %v1717
        %v1773 = vadd.f32 %v1687, %v1721
        %v1774 = vadd.f32 %v1688, %v1709
        %v1775 = vadd.f32 %v1689, %v1713
        %v1776 = vadd.f32 %v1690, %v1717
        %v1777 = vadd.f32 %v1691, %v1721
        %v1778 = vadd.f32 %v1692, %v1709
        %v1779 = vadd.f32 %v1693, %v1713
        %v1780 = vadd.f32 %v1694, %v1717
        %v1781 = vadd.f32 %v1695, %v1721
        %v1782 = vadd.f32 %v1696, %v1709
        %v1783 = vadd.f32 %v1697, %v1713
        %v1784 = vadd.f32 %v1698, %v1717
        %v1785 = vadd.f32 %v1699, %v1721
        %v1786 = vadd.f32 %v1700, %v1709
        %v1787 = vadd.f32 %v1701, %v1713
        %v1788 = vadd.f32 %v1702, %v1717
        %v1789 = vadd.f32 %v1703, %v1721
        %v1790 = vmul.f32 %v1726, 0.5
        %v1791 = vmul.f32 %v1727, 0.5
        %v1792 = vmul.f32 %v1728, 0.5
        %v1793 = vmul.f32 %v1729, 0.5
        %v1794 = vmul.f32 %v1730, 0.5
        %v1795 = vmul.f32 %v1731, 0.5
        %v1796 = vmul.f32 %v1732, 0.5
        %v1797 = vmul.f32 %v1733, 0.5
        %v1798 = vmul.f32 %v1734, 0.5
        %v1799 = vmul.f32 %v1735, 0.5
        %v1800 = vmul.f32 %v1736, 0.5
        %v1801 = vmul.f32 %v1737, 0.5
        %v1802 = vmul.f32 %v1738, 0.5
        %v1803 = vmul.f32 %v1739, 0.5
        %v1804 = vmul.f32 %v1740, 0.5
        %v1805 = vmul.f32 %v1741, 0.5
        %v1806 = vmul.f32 %v1742, 0.5
        %v1807 = vmul.f32 %v1743, 0.5
        %v1808 = vmul.f32 %v1744, 0.5
        %v1809 = vmul.f32 %v1745, 0.5
        %v1810 = vmul.f32 %v1746, 0.5
        %v1811 = vmul.f32 %v1747, 0.5
        %v1812 = vmul.f32 %v1748, 0.5
        %v1813 = vmul.f32 %v1749, 0.5
        %v1814 = vmul.f32 %v1750, 0.5
        %v1815 = vmul.f32 %v1751, 0.5
        %v1816 = vmul.f32 %v1752, 0.5
        %v1817 = vmul.f32 %v1753, 0.5
        %v1818 = vmul.f32 %v1754, 0.5
        %v1819 = vmul.f32 %v1755, 0.5
        %v1820 = vmul.f32 %v1756, 0.5
        %v1821 = vmul.f32 %v1757, 0.5
        %v1822 = vmul.f32 %v1758, 0.5
        %v1823 = vmul.f32 %v1759, 0.5
        %v1824 = vmul.f32 %v1760, 0.5
        %v1825 = vmul.f32 %v1761, 0.5
        %v1826 = vmul.f32 %v1762, 0.5
        %v1827 = vmul.f32 %v1763, 0.5
        %v1828 = vmul.f32 %v1764, 0.5
        %v1829 = vmul.f32 %v1765, 0.5
        %v1830 = vmul.f32 %v1766, 0.5
        %v1831 = vmul.f32 %v1767, 0.5
        %v1832 = vmul.f32 %v1768, 0.5
        %v1833 = vmul.f32 %v1769, 0.5
        %v1834 = vmul.f32 %v1770, 0.5
        %v1835 = vmul.f32 %v1771, 0.5
        %v1836 = vmul.f32 %v1772, 0.5
        %v1837 = vmul.f32 %v1773, 0.5
        %v1838 = vmul.f32 %v1774, 0.5
        %v1839 = vmul.f32 %v1775, 0.5
        %v1840 = vmul.f32 %v1776, 0.5
        %v1841 = vmul.f32 %v1777, 0.5
        %v1842 = vmul.f32 %v1778, 0.5
        %v1843 = vmul.f32 %v1779, 0.5
        %v1844 = vmul.f32 %v1780, 0.5
        %v1845 = vmul.f32 %v1781, 0.5
        %v1846 = vmul.f32 %v1782, 0.5
        %v1847 = vmul.f32 %v1783, 0.5
        %v1848 = vmul.f32 %v1784, 0.5
        %v1849 = vmul.f32 %v1785, 0.5
        %v1850 = vmul.f32 %v1786, 0.5
        %v1851 = vmul.f32 %v1787, 0.5
        %v1852 = vmul.f32 %v1788, 0.5
        %v1853 = vmul.f32 %v1789, 0.5
        %v1854 = vmul.f32 %v1726, 0.70710677
        %v1855 = vmul.f32 %v1727, 0.70710677
        %v1856 = vmul.f32 %v1728, 0.70710677
        %v1857 = vmul.f32 %v1729, 0.70710677
        %v1858 = vmul.f32 %v1730, 0.70710677
        %v1859 = vmul.f32 %v1731, 0.70710677
        %v1860 = vmul.f32 %v1732, 0.70710677
        %v1861 = vmul.f32 %v1733, 0.70710677
        %v1862 = vmul.f32 %v1734, 0.70710677
        %v1863 = vmul.f32 %v1735, 0.70710677
        %v1864 = vmul.f32 %v1736, 0.70710677
        %v1865 = vmul.f32 %v1737, 0.70710677
        %v1866 = vmul.f32 %v1738, 0.70710677
        %v1867 = vmul.f32 %v1739, 0.70710677
        %v1868 = vmul.f32 %v1740, 0.70710677
        %v1869 = vmul.f32 %v1741, 0.70710677
        %v1870 = vmul.f32 %v1742, 0.70710677
        %v1871 = vmul.f32 %v1743, 0.70710677
        %v1872 = vmul.f32 %v1744, 0.70710677
        %v1873 = vmul.f32 %v1745, 0.70710677
        %v1874 = vmul.f32 %v1746, 0.70710677
        %v1875 = vmul.f32 %v1747, 0.70710677
        %v1876 = vmul.f32 %v1748, 0.70710677
        %v1877 = vmul.f32 %v1749, 0.70710677
        %v1878 = vmul.f32 %v1750, 0.70710677
        %v1879 = vmul.f32 %v1751, 0.70710677
        %v1880 = vmul.f32 %v1752, 0.70710677
        %v1881 = vmul.f32 %v1753, 0.70710677
        %v1882 = vmul.f32 %v1754, 0.70710677
        %v1883 = vmul.f32 %v1755, 0.70710677
        %v1884 = vmul.f32 %v1756, 0.70710677
        %v1885 = vmul.f32 %v1757, 0.70710677
        %v1886 = vmul.f32 %v1758, 0.70710677
        %v1887 = vmul.f32 %v1759, 0.70710677
        %v1888 = vmul.f32 %v1760, 0.70710677
        %v1889 = vmul.f32 %v1761, 0.70710677
        %v1890 = vmul.f32 %v1762, 0.70710677
        %v1891 = vmul.f32 %v1763, 0.70710677
        %v1892 = vmul.f32 %v1764, 0.70710677
        %v1893 = vmul.f32 %v1765, 0.70710677
        %v1894 = vmul.f32 %v1766, 0.70710677
        %v1895 = vmul.f32 %v1767, 0.70710677
        %v1896 = vmul.f32 %v1768, 0.70710677
        %v1897 = vmul.f32 %v1769, 0.70710677
        %v1898 = vmul.f32 %v1770, 0.70710677
        %v1899 = vmul.f32 %v1771, 0.70710677
        %v1900 = vmul.f32 %v1772, 0.70710677
        %v1901 = vmul.f32 %v1773, 0.70710677
        %v1902 = vmul.f32 %v1774, 0.70710677
        %v1903 = vmul.f32 %v1775, 0.70710677
        %v1904 = vmul.f32 %v1776, 0.70710677
        %v1905 = vmul.f32 %v1777, 0.70710677
        %v1906 = vmul.f32 %v1778, 0.70710677
        %v1907 = vmul.f32 %v1779, 0.70710677
        %v1908 = vmul.f32 %v1780, 0.70710677
        %v1909 = vmul.f32 %v1781, 0.70710677
        %v1910 = vmul.f32 %v1782, 0.70710677
        %v1911 = vmul.f32 %v1783, 0.70710677
        %v1912 = vmul.f32 %v1784, 0.70710677
        %v1913 = vmul.f32 %v1785, 0.70710677
        %v1914 = vmul.f32 %v1786, 0.70710677
        %v1915 = vmul.f32 %v1787, 0.70710677
        %v1916 = vmul.f32 %v1788, 0.70710677
        %v1917 = vmul.f32 %v1789, 0.70710677
        %v1918 = verf.f32.pop %v1854
        %v1919 = verf.f32.pop %v1855
        %v1920 = verf.f32.pop %v1856
        %v1921 = verf.f32.pop %v1857
        %v1922 = verf.f32.pop %v1858
        %v1923 = verf.f32.pop %v1859
        %v1924 = verf.f32.pop %v1860
        %v1925 = verf.f32.pop %v1861
        %v1926 = verf.f32.pop %v1862
        %v1927 = verf.f32.pop %v1863
        %v1928 = verf.f32.pop %v1864
        %v1929 = verf.f32.pop %v1865
        %v1930 = verf.f32.pop %v1866
        %v1931 = verf.f32.pop %v1867
        %v1932 = verf.f32.pop %v1868
        %v1933 = verf.f32.pop %v1869
        %v1934 = verf.f32.pop %v1870
        %v1935 = verf.f32.pop %v1871
        %v1936 = verf.f32.pop %v1872
        %v1937 = verf.f32.pop %v1873
        %v1938 = verf.f32.pop %v1874
        %v1939 = verf.f32.pop %v1875
        %v1940 = verf.f32.pop %v1876
        %v1941 = verf.f32.pop %v1877
        %v1942 = verf.f32.pop %v1878
        %v1943 = verf.f32.pop %v1879
        %v1944 = verf.f32.pop %v1880
        %v1945 = verf.f32.pop %v1881
        %v1946 = verf.f32.pop %v1882
        %v1947 = verf.f32.pop %v1883
        %v1948 = verf.f32.pop %v1884
        %v1949 = verf.f32.pop %v1885
        %v1950 = verf.f32.pop %v1886
        %v1951 = verf.f32.pop %v1887
        %v1952 = verf.f32.pop %v1888
        %v1953 = verf.f32.pop %v1889
        %v1954 = verf.f32.pop %v1890
        %v1955 = verf.f32.pop %v1891
        %v1956 = verf.f32.pop %v1892
        %v1957 = verf.f32.pop %v1893
        %v1958 = verf.f32.pop %v1894
        %v1959 = verf.f32.pop %v1895
        %v1960 = verf.f32.pop %v1896
        %v1961 = verf.f32.pop %v1897
        %v1962 = verf.f32.pop %v1898
        %v1963 = verf.f32.pop %v1899
        %v1964 = verf.f32.pop %v1900
        %v1965 = verf.f32.pop %v1901
        %v1966 = verf.f32.pop %v1902
        %v1967 = verf.f32.pop %v1903
        %v1968 = verf.f32.pop %v1904
        %v1969 = verf.f32.pop %v1905
        %v1970 = verf.f32.pop %v1906
        %v1971 = verf.f32.pop %v1907
        %v1972 = verf.f32.pop %v1908
        %v1973 = verf.f32.pop %v1909
        %v1974 = verf.f32.pop %v1910
        %v1975 = verf.f32.pop %v1911
        %v1976 = verf.f32.pop %v1912
        %v1977 = verf.f32.pop %v1913
        %v1978 = verf.f32.pop %v1914
        %v1979 = verf.f32.pop %v1915
        %v1980 = verf.f32.pop %v1916
        %v1981 = verf.f32.pop %v1917
        %v1982 = vadd.f32 %v1918, 1.0
        %v1983 = vadd.f32 %v1919, 1.0
        %v1984 = vadd.f32 %v1920, 1.0
        %v1985 = vadd.f32 %v1921, 1.0
        %v1986 = vadd.f32 %v1922, 1.0
        %v1987 = vadd.f32 %v1923, 1.0
        %v1988 = vadd.f32 %v1924, 1.0
        %v1989 = vadd.f32 %v1925, 1.0
        %v1990 = vadd.f32 %v1926, 1.0
        %v1991 = vadd.f32 %v1927, 1.0
        %v1992 = vadd.f32 %v1928, 1.0
        %v1993 = vadd.f32 %v1929, 1.0
        %v1994 = vadd.f32 %v1930, 1.0
        %v1995 = vadd.f32 %v1931, 1.0
        %v1996 = vadd.f32 %v1932, 1.0
        %v1997 = vadd.f32 %v1933, 1.0
        %v1998 = vadd.f32 %v1934, 1.0
        %v1999 = vadd.f32 %v1935, 1.0
        %v2000 = vadd.f32 %v1936, 1.0
        %v2001 = vadd.f32 %v1937, 1.0
        %v2002 = vadd.f32 %v1938, 1.0
        %v2003 = vadd.f32 %v1939, 1.0
        %v2004 = vadd.f32 %v1940, 1.0
        %v2005 = vadd.f32 %v1941, 1.0
        %v2006 = vadd.f32 %v1942, 1.0
        %v2007 = vadd.f32 %v1943, 1.0
        %v2008 = vadd.f32 %v1944, 1.0
        %v2009 = vadd.f32 %v1945, 1.0
        %v2010 = vadd.f32 %v1946, 1.0
        %v2011 = vadd.f32 %v1947, 1.0
        %v2012 = vadd.f32 %v1948, 1.0
        %v2013 = vadd.f32 %v1949, 1.0
        %v2014 = vadd.f32 %v1950, 1.0
        %v2015 = vadd.f32 %v1951, 1.0
        %v2016 = vadd.f32 %v1952, 1.0
        %v2017 = vadd.f32 %v1953, 1.0
        %v2018 = vadd.f32 %v1954, 1.0
        %v2019 = vadd.f32 %v1955, 1.0
        %v2020 = vadd.f32 %v1956, 1.0
        %v2021 = vadd.f32 %v1957, 1.0
        %v2022 = vadd.f32 %v1958, 1.0
        %v2023 = vadd.f32 %v1959, 1.0
        %v2024 = vadd.f32 %v1960, 1.0
        %v2025 = vadd.f32 %v1961, 1.0
        %v2026 = vadd.f32 %v1962, 1.0
        %v2027 = vadd.f32 %v1963, 1.0
        %v2028 = vadd.f32 %v1964, 1.0
        %v2029 = vadd.f32 %v1965, 1.0
        %v2030 = vadd.f32 %v1966, 1.0
        %v2031 = vadd.f32 %v1967, 1.0
        %v2032 = vadd.f32 %v1968, 1.0
        %v2033 = vadd.f32 %v1969, 1.0
        %v2034 = vadd.f32 %v1970, 1.0
        %v2035 = vadd.f32 %v1971, 1.0
        %v2036 = vadd.f32 %v1972, 1.0
        %v2037 = vadd.f32 %v1973, 1.0
        %v2038 = vadd.f32 %v1974, 1.0
        %v2039 = vadd.f32 %v1975, 1.0
        %v2040 = vadd.f32 %v1976, 1.0
        %v2041 = vadd.f32 %v1977, 1.0
        %v2042 = vadd.f32 %v1978, 1.0
        %v2043 = vadd.f32 %v1979, 1.0
        %v2044 = vadd.f32 %v1980, 1.0
        %v2045 = vadd.f32 %v1981, 1.0
        %v2046 = vmul.f32 %v1790, %v1982
        %v2047 = vmul.f32 %v1791, %v1983
        %v2048 = vmul.f32 %v1792, %v1984
        %v2049 = vmul.f32 %v1793, %v1985
        %v2050 = vmul.f32 %v1794, %v1986
        %v2051 = vmul.f32 %v1795, %v1987
        %v2052 = vmul.f32 %v1796, %v1988
        %v2053 = vmul.f32 %v1797, %v1989
        %v2054 = vmul.f32 %v1798, %v1990
        %v2055 = vmul.f32 %v1799, %v1991
        %v2056 = vmul.f32 %v1800, %v1992
        %v2057 = vmul.f32 %v1801, %v1993
        %v2058 = vmul.f32 %v1802, %v1994
        %v2059 = vmul.f32 %v1803, %v1995
        %v2060 = vmul.f32 %v1804, %v1996
        %v2061 = vmul.f32 %v1805, %v1997
        %v2062 = vmul.f32 %v1806, %v1998
        %v2063 = vmul.f32 %v1807, %v1999
        %v2064 = vmul.f32 %v1808, %v2000
        %v2065 = vmul.f32 %v1809, %v2001
        %v2066 = vmul.f32 %v1810, %v2002
        %v2067 = vmul.f32 %v1811, %v2003
        %v2068 = vmul.f32 %v1812, %v2004
        %v2069 = vmul.f32 %v1813, %v2005
        %v2070 = vmul.f32 %v1814, %v2006
        %v2071 = vmul.f32 %v1815, %v2007
        %v2072 = vmul.f32 %v1816, %v2008
        %v2073 = vmul.f32 %v1817, %v2009
        %v2074 = vmul.f32 %v1818, %v2010
        %v2075 = vmul.f32 %v1819, %v2011
        %v2076 = vmul.f32 %v1820, %v2012
        %v2077 = vmul.f32 %v1821, %v2013
        %v2078 = vmul.f32 %v1822, %v2014
        %v2079 = vmul.f32 %v1823, %v2015
        %v2080 = vmul.f32 %v1824, %v2016
        %v2081 = vmul.f32 %v1825, %v2017
        %v2082 = vmul.f32 %v1826, %v2018
        %v2083 = vmul.f32 %v1827, %v2019
        %v2084 = vmul.f32 %v1828, %v2020
        %v2085 = vmul.f32 %v1829, %v2021
        %v2086 = vmul.f32 %v1830, %v2022
        %v2087 = vmul.f32 %v1831, %v2023
        %v2088 = vmul.f32 %v1832, %v2024
        %v2089 = vmul.f32 %v1833, %v2025
        %v2090 = vmul.f32 %v1834, %v2026
        %v2091 = vmul.f32 %v1835, %v2027
        %v2092 = vmul.f32 %v1836, %v2028
        %v2093 = vmul.f32 %v1837, %v2029
        %v2094 = vmul.f32 %v1838, %v2030
        %v2095 = vmul.f32 %v1839, %v2031
        %v2096 = vmul.f32 %v1840, %v2032
        %v2097 = vmul.f32 %v1841, %v2033
        %v2098 = vmul.f32 %v1842, %v2034
        %v2099 = vmul.f32 %v1843, %v2035
        %v2100 = vmul.f32 %v1844, %v2036
        %v2101 = vmul.f32 %v1845, %v2037
        %v2102 = vmul.f32 %v1846, %v2038
        %v2103 = vmul.f32 %v1847, %v2039
        %v2104 = vmul.f32 %v1848, %v2040
        %v2105 = vmul.f32 %v1849, %v2041
        %v2106 = vmul.f32 %v1850, %v2042
        %v2107 = vmul.f32 %v1851, %v2043
        %v2108 = vmul.f32 %v1852, %v2044
        %v2109 = vmul.f32 %v1853, %v2045
        %2110 = vst [vmem:[%s191] sm:$0xff] %v2046
        %2111 = vst [vmem:[%s191 + $0x8] sm:$0xff] %v2047
        %2112 = vst [vmem:[%s191 + $0x10] sm:$0xff] %v2048
        %2113 = vst [vmem:[%s191 + $0x18] sm:$0xff] %v2049
        %2114 = vst [vmem:[%s191 + $0x20] sm:$0xff] %v2050
        %2115 = vst [vmem:[%s191 + $0x28] sm:$0xff] %v2051
        %2116 = vst [vmem:[%s191 + $0x30] sm:$0xff] %v2052
        %2117 = vst [vmem:[%s191 + $0x38] sm:$0xff] %v2053
        %2118 = vst [vmem:[%s191 + $0x40] sm:$0xff] %v2054
        %2119 = vst [vmem:[%s191 + $0x48] sm:$0xff] %v2055
        %2120 = vst [vmem:[%s191 + $0x50] sm:$0xff] %v2056
        %2121 = vst [vmem:[%s191 + $0x58] sm:$0xff] %v2057
        %2122 = vst [vmem:[%s191 + $0x60] sm:$0xff] %v2058
        %2123 = vst [vmem:[%s191 + $0x68] sm:$0xff] %v2059
        %2124 = vst [vmem:[%s191 + $0x70] sm:$0xff] %v2060
        %2125 = vst [vmem:[%s191 + $0x78] sm:$0xff] %v2061
        %2126 = vst [vmem:[%s191 + $0x80] sm:$0xff] %v2062
        %2127 = vst [vmem:[%s191 + $0x88] sm:$0xff] %v2063
        %2128 = vst [vmem:[%s191 + $0x90] sm:$0xff] %v2064
        %2129 = vst [vmem:[%s191 + $0x98] sm:$0xff] %v2065
        %2130 = vst [vmem:[%s191 + $0xa0] sm:$0xff] %v2066
        %2131 = vst [vmem:[%s191 + $0xa8] sm:$0xff] %v2067
        %2132 = vst [vmem:[%s191 + $0xb0] sm:$0xff] %v2068
        %2133 = vst [vmem:[%s191 + $0xb8] sm:$0xff] %v2069
        %2134 = vst [vmem:[%s191 + $0xc0] sm:$0xff] %v2070
        %2135 = vst [vmem:[%s191 + $0xc8] sm:$0xff] %v2071
        %2136 = vst [vmem:[%s191 + $0xd0] sm:$0xff] %v2072
        %2137 = vst [vmem:[%s191 + $0xd8] sm:$0xff] %v2073
        %2138 = vst [vmem:[%s191 + $0xe0] sm:$0xff] %v2074
        %2139 = vst [vmem:[%s191 + $0xe8] sm:$0xff] %v2075
        %2140 = vst [vmem:[%s191 + $0xf0] sm:$0xff] %v2076
        %2141 = vst [vmem:[%s191 + $0xf8] sm:$0xff] %v2077
        %2142 = vst [vmem:[%s191 + $0x100] sm:$0xff] %v2078
        %2143 = vst [vmem:[%s191 + $0x108] sm:$0xff] %v2079
        %2144 = vst [vmem:[%s191 + $0x110] sm:$0xff] %v2080
        %2145 = vst [vmem:[%s191 + $0x118] sm:$0xff] %v2081
        %2146 = vst [vmem:[%s191 + $0x120] sm:$0xff] %v2082
        %2147 = vst [vmem:[%s191 + $0x128] sm:$0xff] %v2083
        %2148 = vst [vmem:[%s191 + $0x130] sm:$0xff] %v2084
        %2149 = vst [vmem:[%s191 + $0x138] sm:$0xff] %v2085
        %2150 = vst [vmem:[%s191 + $0x140] sm:$0xff] %v2086
        %2151 = vst [vmem:[%s191 + $0x148] sm:$0xff] %v2087
        %2152 = vst [vmem:[%s191 + $0x150] sm:$0xff] %v2088
        %2153 = vst [vmem:[%s191 + $0x158] sm:$0xff] %v2089
        %2154 = vst [vmem:[%s191 + $0x160] sm:$0xff] %v2090
        %2155 = vst [vmem:[%s191 + $0x168] sm:$0xff] %v2091
        %2156 = vst [vmem:[%s191 + $0x170] sm:$0xff] %v2092
        %2157 = vst [vmem:[%s191 + $0x178] sm:$0xff] %v2093
        %2158 = vst [vmem:[%s191 + $0x180] sm:$0xff] %v2094
        %2159 = vst [vmem:[%s191 + $0x188] sm:$0xff] %v2095
        %2160 = vst [vmem:[%s191 + $0x190] sm:$0xff] %v2096
        %2161 = vst [vmem:[%s191 + $0x198] sm:$0xff] %v2097
        %2162 = vst [vmem:[%s191 + $0x1a0] sm:$0xff] %v2098
        %2163 = vst [vmem:[%s191 + $0x1a8] sm:$0xff] %v2099
        %2164 = vst [vmem:[%s191 + $0x1b0] sm:$0xff] %v2100
        %2165 = vst [vmem:[%s191 + $0x1b8] sm:$0xff] %v2101
        %2166 = vst [vmem:[%s191 + $0x1c0] sm:$0xff] %v2102
        %2167 = vst [vmem:[%s191 + $0x1c8] sm:$0xff] %v2103
        %2168 = vst [vmem:[%s191 + $0x1d0] sm:$0xff] %v2104
        %2169 = vst [vmem:[%s191 + $0x1d8] sm:$0xff] %v2105
        %2170 = vst [vmem:[%s191 + $0x1e0] sm:$0xff] %v2106
        %2171 = vst [vmem:[%s191 + $0x1e8] sm:$0xff] %v2107
        %2172 = vst [vmem:[%s191 + $0x1f0] sm:$0xff] %v2108
        %2173 = vst [vmem:[%s191 + $0x1f8] sm:$0xff] %v2109
        %s2174 = sand.u32 %s115, 1
        %s2175 = scalar_lea.sflag [#allocation3], %s2174
        %s2176 = sand.u32 %s115, 1
        %s2177 = smul.addr %s2176, 512
        %s2178 = scalar_lea.vmem [#allocation2], %s2177
        // Predicated region
        $region37: #{tpu_custom_call.1} parent=35 // pred_check
          %p2179 = pneg %p125
        $region38: #{tpu_custom_call.1} parent=35 // pred_check_branch
          %2181 = sbr.rel (%p2179) target = $region40
        $region39: #{tpu_custom_call.1} parent=35 // pred_region
          %s2182 = smul.u32 16, %s18
          %s2184 = ssub.s32 8192, 8192
          %2185 = vsyncadd %s2175, %s2184
          %s2186 = smul.addr %s2182, 4
          %s2187 = smul.addr %s2186, 128
          %s2188 = scalar_lea.hbm %s4, %s2187
          %s2189 = sshll.u32 %s2178, 4
          %s2190 = int_to_ptr.vmem [resolvable:$true] %s2189
          %2195 = dma.vmem_to_hbm [thread:$0]  %s2190, 8192, %s2188, %s2175, 512, 512, 32
        $region40: #{tpu_custom_call.1} parent=35 // pred_fallthru
          _
      $region36: #{tpu_custom_call.1} parent=5 // pred_fallthru
        _
      %p2196 = scmp.le.s32.totalorder 2, %s13
      // Predicated region
      $region41: #{tpu_custom_call.1} parent=5 // pred_check
        %p2197 = pneg %p2196
      $region42: #{tpu_custom_call.1} parent=5 // pred_check_branch
        %2199 = sbr.rel (%p2197) target = $region44
      $region43: #{tpu_custom_call.1} parent=5 // pred_region
        %s2200 = ssub.s32 %s13, 2
        // Predicated region
        $region45: #{tpu_custom_call.1} parent=43 // pred_check
          %p2201 = pneg %p131
        $region46: #{tpu_custom_call.1} parent=43 // pred_check_branch
          %2203 = sbr.rel (%p2201) target = $region48
        $region47: #{tpu_custom_call.1} parent=43 // pred_region
          %s2204 = sand.u32 %s116, 1
          %s2205 = scalar_lea.sflag [#allocation3], %s2204
          %s2206 = sand.u32 %s116, 1
          %s2207 = smul.addr %s2206, 512
          %s2208 = scalar_lea.vmem [#allocation2], %s2207
          %2209 = dma.done %s2205, 8192
        $region48: #{tpu_custom_call.1} parent=43 // pred_fallthru
          _
      $region44: #{tpu_custom_call.1} parent=5 // pred_fallthru
        _
    $region6: #{tpu_custom_call.1} parent=1 // loop_footer
      %s17 = sadd.s32 1, %s13
    $region7: #{tpu_custom_call.1} parent=1 // loop_footer_branch
      %12 = sbr.rel target = $region3
    $region8: #{tpu_custom_call.1} parent=1 // loop_exit
      _
    %2210 = vsyncpa [#allocation3], 1
    %s2211 = scalar_lea.sflag [#allocation3], 1
    %2212 = vsyncpa %s2211, 1

</llo_original>
